<compile_context>
chip_gen: v6e
topology: v6e:2x2x1
jax: 0.10.0
libtpu: 0.0.40
codegen_flags: <defaults>
</compile_context>

<pallas_src>
import jax
import jax.numpy as jnp
from jax.experimental import pallas as pl
from jax.experimental.pallas import tpu as pltpu


# ---------------------------------------------------------------------------
# Config (synthetic Longformer-like)
# ---------------------------------------------------------------------------
VOCAB = 100
MAX_POS = 64
HIDDEN = 32
N_HEADS = 4
HEAD_DIM = HIDDEN // N_HEADS
FFN = 64
N_LAYERS = 2
PAD_IDX = 1          # Longformer positions start at padding_idx + 1
LN_EPS = 1e-5


# ---------------------------------------------------------------------------
# Fused Pallas kernel. Grid = (batch [parallel], layer [arbitrary]).
# Per grid step: one transformer layer for one sequence.  Activations persist
# in VMEM scratch across the layer axis; weights stream per layer.
# ---------------------------------------------------------------------------
def _backbone_kernel(
    emb_ref,                      # (1, S, H)  bf16  (word+pos+type sum, pre-LN)
    emb_ln_g_ref, emb_ln_b_ref,   # (1, H)     f32
    wqkv_ref, bqkv_ref,           # (1, H, 3H) bf16, (1, 1, 3H) f32   [layer l]
    wo_ref, bo_ref,               # (1, H, H)  bf16, (1, 1, H)  f32   [layer l]
    ln1_g_ref, ln1_b_ref,         # (1, 1, H)  f32                    [layer l]
    w1_ref, b1_ref,               # (1, H, F)  bf16, (1, 1, F)  f32   [layer l]
    w2_ref, b2_ref,               # (1, F, H)  bf16, (1, 1, H)  f32   [layer l]
    ln2_g_ref, ln2_b_ref,         # (1, 1, H)  f32                    [layer l]
    pool_w_ref, pool_b_ref,       # (H, H)     bf16, (1, H)     f32
    hidden_ref,                   # out (1, S, H) f32    [batch b]
    pooled_ref,                   # out (1, 1, H) f32    [batch b]
    x_scratch,                    # VMEM (S, H) f32 — persists across layer axis
):
    l = pl.program_id(1)
    scale = 1.0 / (HEAD_DIM ** 0.5)

    def layernorm(h, g, b):
        mu = jnp.mean(h, axis=-1, keepdims=True)
        var = jnp.mean((h - mu) ** 2, axis=-1, keepdims=True)
        return (h - mu) * jax.lax.rsqrt(var + LN_EPS) * g + b

    def mm(x_f32, w_bf16):
        # bf16 MXU matmul with f32 accumulation (single cast of the activation).
        return jnp.dot(x_f32.astype(jnp.bfloat16), w_bf16,
                       preferred_element_type=jnp.float32)

    # ---- Init at first layer: embedding LayerNorm -------------------------
    @pl.when(l == 0)
    def _():
        e = emb_ref[0].astype(jnp.float32)                      # [S, H]
        x_scratch[...] = layernorm(e, emb_ln_g_ref[...], emb_ln_b_ref[...])

    x = x_scratch[...]                                          # [S, H] f32

    # ---- Self-attention (heads batched, per-sequence scores) ---------------
    qkv = mm(x, wqkv_ref[0]) + bqkv_ref[0]                      # [S, 3H] f32

    def split_heads(t2d):                                       # [S,H] -> [NH,S,HD]
        return jnp.stack(
            [t2d[:, h * HEAD_DIM:(h + 1) * HEAD_DIM] for h in range(N_HEADS)],
            axis=0)

    q = split_heads(qkv[:, 0 * HIDDEN:1 * HIDDEN]) * scale      # [NH, S, HD]
    k = split_heads(qkv[:, 1 * HIDDEN:2 * HIDDEN])
    v = split_heads(qkv[:, 2 * HIDDEN:3 * HIDDEN])

    s = jnp.einsum('hqd,hkd->hqk', q, k,
                   preferred_element_type=jnp.float32)          # [NH, S, S]
    m = jnp.max(s, axis=-1, keepdims=True)
    p = jnp.exp(s - m)
    inv = pl.reciprocal(jnp.sum(p, axis=-1, keepdims=True), approx=True)
    p = p * inv
    ctx = jnp.einsum('hqk,hkd->hqd', p, v,
                     preferred_element_type=jnp.float32)        # [NH, S, HD]
    ctx2d = jnp.concatenate([ctx[h] for h in range(N_HEADS)], axis=-1)  # [S, H]

    attn_out = mm(ctx2d, wo_ref[0]) + bo_ref[0]
    x = layernorm(attn_out + x, ln1_g_ref[0], ln1_b_ref[0])

    # ---- Feed-forward: w1 -> tanh-GELU (EUP) -> w2 --------------------------
    hmid = mm(x, w1_ref[0]) + b1_ref[0]
    hmid = jax.nn.gelu(hmid, approximate=True)
    ffn_out = mm(hmid, w2_ref[0]) + b2_ref[0]
    x = layernorm(ffn_out + x, ln2_g_ref[0], ln2_b_ref[0])

    x_scratch[...] = x

    # ---- Finalize at last layer: hidden state + pooler ---------------------
    @pl.when(l == pl.num_programs(1) - 1)
    def _():
        hidden_ref[...] = x.reshape(hidden_ref.shape).astype(hidden_ref.dtype)
        first = x[0:1, :]                                       # CLS row of this seq
        pooled = jnp.tanh(mm(first, pool_w_ref[...]) + pool_b_ref[...])
        pooled_ref[...] = pooled.reshape(pooled_ref.shape).astype(pooled_ref.dtype)


# ---------------------------------------------------------------------------
# Parameter construction (deterministic, synthetic)
# ---------------------------------------------------------------------------
def init_params(key):
    def normal(k, shape, dtype=jnp.float32):
        return (jax.random.normal(k, shape, dtype=jnp.float32) * 0.02).astype(dtype)

    keys = iter(jax.random.split(key, 16))
    wdt = jnp.bfloat16  # MXU-native weight storage; f32 accumulation in-kernel
    return {
        "word_emb": normal(next(keys), (VOCAB, HIDDEN)),
        "pos_emb": normal(next(keys), (MAX_POS, HIDDEN)),
        "type_emb": normal(next(keys), (1, HIDDEN)),
        "emb_ln_g": jnp.ones((1, HIDDEN), jnp.float32),
        "emb_ln_b": jnp.zeros((1, HIDDEN), jnp.float32),
        "wqkv": normal(next(keys), (N_LAYERS, HIDDEN, 3 * HIDDEN), wdt),
        "bqkv": jnp.zeros((N_LAYERS, 1, 3 * HIDDEN), jnp.float32),
        "wo": normal(next(keys), (N_LAYERS, HIDDEN, HIDDEN), wdt),
        "bo": jnp.zeros((N_LAYERS, 1, HIDDEN), jnp.float32),
        "ln1_g": jnp.ones((N_LAYERS, 1, HIDDEN), jnp.float32),
        "ln1_b": jnp.zeros((N_LAYERS, 1, HIDDEN), jnp.float32),
        "w1": normal(next(keys), (N_LAYERS, HIDDEN, FFN), wdt),
        "b1": jnp.zeros((N_LAYERS, 1, FFN), jnp.float32),
        "w2": normal(next(keys), (N_LAYERS, FFN, HIDDEN), wdt),
        "b2": jnp.zeros((N_LAYERS, 1, HIDDEN), jnp.float32),
        "ln2_g": jnp.ones((N_LAYERS, 1, HIDDEN), jnp.float32),
        "ln2_b": jnp.zeros((N_LAYERS, 1, HIDDEN), jnp.float32),
        "pool_w": normal(next(keys), (HIDDEN, HIDDEN), wdt),
        "pool_b": jnp.zeros((1, HIDDEN), jnp.float32),
    }


# ---------------------------------------------------------------------------
# Forward pass: input_ids -> (last_hidden_state, pooler_output)
# ---------------------------------------------------------------------------
def backbone_forward(params, input_ids):
    B, S = input_ids.shape

    # Embedding gathers stay in plain JAX glue (XLA gather); the sum is passed
    # to the kernel in bf16 (half the DMA bytes).  LayerNorm onward is fused.
    pos_ids = jnp.arange(S, dtype=jnp.int32) + PAD_IDX + 1
    emb = (params["word_emb"][input_ids]
           + params["pos_emb"][pos_ids][None, :, :]
           + params["type_emb"][0][None, None, :])              # [B, S, H] f32
    emb = emb.astype(jnp.bfloat16)

    inputs = (
        emb,
        params["emb_ln_g"], params["emb_ln_b"],
        params["wqkv"], params["bqkv"],
        params["wo"], params["bo"],
        params["ln1_g"], params["ln1_b"],
        params["w1"], params["b1"],
        params["w2"], params["b2"],
        params["ln2_g"], params["ln2_b"],
        params["pool_w"], params["pool_b"],
    )

    in_specs = [
        # per-batch embedding block
        pl.BlockSpec((1, S, HIDDEN), lambda b, l: (b, 0, 0)),
        # embedding LN params (constant across grid)
        pl.BlockSpec((1, HIDDEN), lambda b, l: (0, 0)),
        pl.BlockSpec((1, HIDDEN), lambda b, l: (0, 0)),
        # per-layer streamed weights / biases / LN params
        pl.BlockSpec((1, HIDDEN, 3 * HIDDEN), lambda b, l: (l, 0, 0)),
        pl.BlockSpec((1, 1, 3 * HIDDEN), lambda b, l: (l, 0, 0)),
        pl.BlockSpec((1, HIDDEN, HIDDEN), lambda b, l: (l, 0, 0)),
        pl.BlockSpec((1, 1, HIDDEN), lambda b, l: (l, 0, 0)),
        pl.BlockSpec((1, 1, HIDDEN), lambda b, l: (l, 0, 0)),
        pl.BlockSpec((1, 1, HIDDEN), lambda b, l: (l, 0, 0)),
        pl.BlockSpec((1, HIDDEN, FFN), lambda b, l: (l, 0, 0)),
        pl.BlockSpec((1, 1, FFN), lambda b, l: (l, 0, 0)),
        pl.BlockSpec((1, FFN, HIDDEN), lambda b, l: (l, 0, 0)),
        pl.BlockSpec((1, 1, HIDDEN), lambda b, l: (l, 0, 0)),
        pl.BlockSpec((1, 1, HIDDEN), lambda b, l: (l, 0, 0)),
        pl.BlockSpec((1, 1, HIDDEN), lambda b, l: (l, 0, 0)),
        # pooler (constant across grid)
        pl.BlockSpec((HIDDEN, HIDDEN), lambda b, l: (0, 0)),
        pl.BlockSpec((1, HIDDEN), lambda b, l: (0, 0)),
    ]
    out_specs = (
        pl.BlockSpec((1, S, HIDDEN), lambda b, l: (b, 0, 0)),
        pl.BlockSpec((1, 1, HIDDEN), lambda b, l: (b, 0, 0)),
    )

    last_hidden, pooled = pl.pallas_call(
        _backbone_kernel,
        out_shape=(
            jax.ShapeDtypeStruct((B, S, HIDDEN), jnp.float32),
            jax.ShapeDtypeStruct((B, 1, HIDDEN), jnp.float32),
        ),
        grid_spec=pltpu.PrefetchScalarGridSpec(
            num_scalar_prefetch=0,
            grid=(B, N_LAYERS),
            in_specs=in_specs,
            out_specs=out_specs,
            scratch_shapes=[pltpu.VMEM((S, HIDDEN), jnp.float32)],
        ),
        compiler_params=pltpu.CompilerParams(
            dimension_semantics=("parallel", "arbitrary")),
    )(*inputs)

    return last_hidden, pooled.reshape(B, HIDDEN)


if __name__ == "__main__":
    key = jax.random.PRNGKey(0)
    pkey, ikey = jax.random.split(key)
    params = init_params(pkey)

    B, S = 2, 8
    input_ids = jax.random.randint(ikey, (B, S), 0, VOCAB, dtype=jnp.int32)

    fwd = jax.jit(backbone_forward)
    last_hidden, pooled = fwd(params, input_ids)
    jax.block_until_ready((last_hidden, pooled))

    assert last_hidden.shape == (B, S, HIDDEN)
    assert pooled.shape == (B, HIDDEN)
    assert bool(jnp.all(jnp.isfinite(last_hidden))) and bool(jnp.all(jnp.isfinite(pooled)))
    print("KERNEL_OK")
</pallas_src>

<mosaic_0001>
module attributes {stable_mosaic.version = 11 : i64} {
  func.func @_backbone_kernel(%arg0: i32, %arg1: i32, %arg2: memref<1x8x32xbf16, #tpu.memory_space<vmem>>, %arg3: memref<1x32xf32, #tpu.memory_space<vmem>>, %arg4: memref<1x32xf32, #tpu.memory_space<vmem>>, %arg5: memref<1x32x96xbf16, #tpu.memory_space<vmem>>, %arg6: memref<1x1x96xf32, #tpu.memory_space<vmem>>, %arg7: memref<1x32x32xbf16, #tpu.memory_space<vmem>>, %arg8: memref<1x1x32xf32, #tpu.memory_space<vmem>>, %arg9: memref<1x1x32xf32, #tpu.memory_space<vmem>>, %arg10: memref<1x1x32xf32, #tpu.memory_space<vmem>>, %arg11: memref<1x32x64xbf16, #tpu.memory_space<vmem>>, %arg12: memref<1x1x64xf32, #tpu.memory_space<vmem>>, %arg13: memref<1x64x32xbf16, #tpu.memory_space<vmem>>, %arg14: memref<1x1x32xf32, #tpu.memory_space<vmem>>, %arg15: memref<1x1x32xf32, #tpu.memory_space<vmem>>, %arg16: memref<1x1x32xf32, #tpu.memory_space<vmem>>, %arg17: memref<32x32xbf16, #tpu.memory_space<vmem>>, %arg18: memref<1x32xf32, #tpu.memory_space<vmem>>, %arg19: memref<1x8x32xf32, #tpu.memory_space<vmem>>, %arg20: memref<1x1x32xf32, #tpu.memory_space<vmem>>, %arg21: memref<8x32xf32, #tpu.memory_space<vmem>>) attributes {dimension_semantics = [#tpu.dimension_semantics<parallel>, #tpu.dimension_semantics<arbitrary>], iteration_bounds = array<i64: 2, 2>, scalar_prefetch = 0 : i64, scratch_operands = 1 : i64, tpu.core_type = #tpu.core_type<tc>, window_params = [{transform_indices = @transform_0, window_bounds = array<i64: 1, 8, 32>}, {pipeline_mode = #tpu.pipeline_mode<synchronous>, transform_indices = @transform_1, window_bounds = array<i64: 1, 32>}, {pipeline_mode = #tpu.pipeline_mode<synchronous>, transform_indices = @transform_2, window_bounds = array<i64: 1, 32>}, {transform_indices = @transform_3, window_bounds = array<i64: 1, 32, 96>}, {transform_indices = @transform_4, window_bounds = array<i64: 1, 1, 96>}, {transform_indices = @transform_5, window_bounds = array<i64: 1, 32, 32>}, {transform_indices = @transform_6, window_bounds = array<i64: 1, 1, 32>}, {transform_indices = @transform_7, window_bounds = array<i64: 1, 1, 32>}, {transform_indices = @transform_8, window_bounds = array<i64: 1, 1, 32>}, {transform_indices = @transform_9, window_bounds = array<i64: 1, 32, 64>}, {transform_indices = @transform_10, window_bounds = array<i64: 1, 1, 64>}, {transform_indices = @transform_11, window_bounds = array<i64: 1, 64, 32>}, {transform_indices = @transform_12, window_bounds = array<i64: 1, 1, 32>}, {transform_indices = @transform_13, window_bounds = array<i64: 1, 1, 32>}, {transform_indices = @transform_14, window_bounds = array<i64: 1, 1, 32>}, {pipeline_mode = #tpu.pipeline_mode<synchronous>, transform_indices = @transform_15, window_bounds = array<i64: 32, 32>}, {pipeline_mode = #tpu.pipeline_mode<synchronous>, transform_indices = @transform_16, window_bounds = array<i64: 1, 32>}, {transform_indices = @transform_17, window_bounds = array<i64: 1, 8, 32>}, {transform_indices = @transform_18, window_bounds = array<i64: 1, 1, 32>}]} {
    %c0_i32 = arith.constant 0 : i32
    %0 = arith.cmpi eq, %arg1, %c0_i32 : i32
    %1 = arith.extui %0 : i1 to i32
    %c0_i32_0 = arith.constant 0 : i32
    %2 = arith.cmpi ne, %1, %c0_i32_0 : i32
    scf.if %2 {
      %c0_63 = arith.constant 0 : index
      %c0_64 = arith.constant 0 : index
      %c0_65 = arith.constant 0 : index
      %160 = vector.load %arg2[%c0_63, %c0_64, %c0_65] : memref<1x8x32xbf16, #tpu.memory_space<vmem>>, vector<1x8x32xbf16>
      %161 = vector.shape_cast %160 : vector<1x8x32xbf16> to vector<8x32xbf16>
      %162 = arith.extf %161 : vector<8x32xbf16> to vector<8x32xf32>
      %c0_66 = arith.constant 0 : index
      %c0_67 = arith.constant 0 : index
      %163 = vector.load %arg3[%c0_66, %c0_67] : memref<1x32xf32, #tpu.memory_space<vmem>>, vector<1x32xf32>
      %c0_68 = arith.constant 0 : index
      %c0_69 = arith.constant 0 : index
      %164 = vector.load %arg4[%c0_68, %c0_69] : memref<1x32xf32, #tpu.memory_space<vmem>>, vector<1x32xf32>
      %cst_70 = arith.constant dense<0.000000e+00> : vector<8xf32>
      %165 = vector.multi_reduction <add>, %162, %cst_70 [1] : vector<8x32xf32> to vector<8xf32>
      %166 = vector.shape_cast %165 : vector<8xf32> to vector<8x1xf32>
      %cst_71 = arith.constant 3.200000e+01 : f32
      %167 = vector.broadcast %cst_71 : f32 to vector<8x1xf32>
      %168 = arith.divf %166, %167 : vector<8x1xf32>
      %169 = vector.broadcast %168 : vector<8x1xf32> to vector<8x32xf32>
      %170 = arith.subf %162, %169 : vector<8x32xf32>
      %171 = arith.mulf %170, %170 : vector<8x32xf32>
      %cst_72 = arith.constant dense<0.000000e+00> : vector<8xf32>
      %172 = vector.multi_reduction <add>, %171, %cst_72 [1] : vector<8x32xf32> to vector<8xf32>
      %173 = vector.shape_cast %172 : vector<8xf32> to vector<8x1xf32>
      %cst_73 = arith.constant 3.200000e+01 : f32
      %174 = vector.broadcast %cst_73 : f32 to vector<8x1xf32>
      %175 = arith.divf %173, %174 : vector<8x1xf32>
      %176 = vector.broadcast %168 : vector<8x1xf32> to vector<8x32xf32>
      %177 = arith.subf %162, %176 : vector<8x32xf32>
      %cst_74 = arith.constant 9.99999974E-6 : f32
      %178 = vector.broadcast %cst_74 : f32 to vector<8x1xf32>
      %179 = arith.addf %175, %178 : vector<8x1xf32>
      %180 = math.rsqrt %179 : vector<8x1xf32>
      %181 = vector.broadcast %180 : vector<8x1xf32> to vector<8x32xf32>
      %182 = arith.mulf %177, %181 : vector<8x32xf32>
      %183 = vector.broadcast %163 : vector<1x32xf32> to vector<8x32xf32>
      %184 = arith.mulf %182, %183 : vector<8x32xf32>
      %185 = vector.broadcast %164 : vector<1x32xf32> to vector<8x32xf32>
      %186 = arith.addf %184, %185 : vector<8x32xf32>
      %c0_75 = arith.constant 0 : index
      %c0_76 = arith.constant 0 : index
      %187 = vector.load %arg21[%c0_75, %c0_76] : memref<8x32xf32, #tpu.memory_space<vmem>>, vector<8x32xf32>
      tpu.vector_store %arg21[%c0_75, %c0_76], %186 {strides = array<i32>} : memref<8x32xf32, #tpu.memory_space<vmem>>, vector<8x32xf32>,
    } else {
    }
    %c0 = arith.constant 0 : index
    %c0_1 = arith.constant 0 : index
    %3 = vector.load %arg21[%c0, %c0_1] : memref<8x32xf32, #tpu.memory_space<vmem>>, vector<8x32xf32>
    %c0_2 = arith.constant 0 : index
    %c0_3 = arith.constant 0 : index
    %c0_4 = arith.constant 0 : index
    %4 = vector.load %arg5[%c0_2, %c0_3, %c0_4] : memref<1x32x96xbf16, #tpu.memory_space<vmem>>, vector<1x32x96xbf16>
    %5 = vector.shape_cast %4 : vector<1x32x96xbf16> to vector<32x96xbf16>
    %6 = arith.truncf %3 : vector<8x32xf32> to vector<8x32xbf16>
    %cst = arith.constant dense<0.000000e+00> : vector<8x96xf32>
    %7 = tpu.matmul %6, %5, %cst {dimension_numbers = #tpu.dot_dimension_numbers<[1], [0], [0], [1], [0, 0, 1, 1], [], []>} : vector<8x32xbf16>, vector<32x96xbf16>, vector<8x96xf32> -> vector<8x96xf32>
    %c0_5 = arith.constant 0 : index
    %c0_6 = arith.constant 0 : index
    %c0_7 = arith.constant 0 : index
    %8 = vector.load %arg6[%c0_5, %c0_6, %c0_7] : memref<1x1x96xf32, #tpu.memory_space<vmem>>, vector<1x1x96xf32>
    %9 = vector.shape_cast %8 : vector<1x1x96xf32> to vector<1x96xf32>
    %10 = vector.broadcast %9 : vector<1x96xf32> to vector<8x96xf32>
    %11 = arith.addf %7, %10 : vector<8x96xf32>
    %12 = vector.extract_strided_slice %11 {offsets = [0, 0], sizes = [8, 32], strides = [1, 1]} : vector<8x96xf32> to vector<8x32xf32>
    %13 = vector.extract_strided_slice %12 {offsets = [0, 0], sizes = [8, 8], strides = [1, 1]} : vector<8x32xf32> to vector<8x8xf32>
    %14 = vector.extract_strided_slice %12 {offsets = [0, 8], sizes = [8, 8], strides = [1, 1]} : vector<8x32xf32> to vector<8x8xf32>
    %15 = vector.extract_strided_slice %12 {offsets = [0, 16], sizes = [8, 8], strides = [1, 1]} : vector<8x32xf32> to vector<8x8xf32>
    %16 = vector.extract_strided_slice %12 {offsets = [0, 24], sizes = [8, 8], strides = [1, 1]} : vector<8x32xf32> to vector<8x8xf32>
    %17 = vector.shape_cast %13 : vector<8x8xf32> to vector<1x8x8xf32>
    %18 = vector.shape_cast %14 : vector<8x8xf32> to vector<1x8x8xf32>
    %19 = vector.shape_cast %15 : vector<8x8xf32> to vector<1x8x8xf32>
    %20 = vector.shape_cast %16 : vector<8x8xf32> to vector<1x8x8xf32>
    %21 = tpu.concatenate %17, %18, %19, %20 in 0 : vector<1x8x8xf32>, vector<1x8x8xf32>, vector<1x8x8xf32>, vector<1x8x8xf32> -> vector<4x8x8xf32>
    %cst_8 = arith.constant 0.353553385 : f32
    %22 = vector.broadcast %cst_8 : f32 to vector<4x8x8xf32>
    %23 = arith.mulf %21, %22 : vector<4x8x8xf32>
    %24 = vector.extract_strided_slice %11 {offsets = [0, 32], sizes = [8, 32], strides = [1, 1]} : vector<8x96xf32> to vector<8x32xf32>
    %25 = vector.extract_strided_slice %24 {offsets = [0, 0], sizes = [8, 8], strides = [1, 1]} : vector<8x32xf32> to vector<8x8xf32>
    %26 = vector.extract_strided_slice %24 {offsets = [0, 8], sizes = [8, 8], strides = [1, 1]} : vector<8x32xf32> to vector<8x8xf32>
    %27 = vector.extract_strided_slice %24 {offsets = [0, 16], sizes = [8, 8], strides = [1, 1]} : vector<8x32xf32> to vector<8x8xf32>
    %28 = vector.extract_strided_slice %24 {offsets = [0, 24], sizes = [8, 8], strides = [1, 1]} : vector<8x32xf32> to vector<8x8xf32>
    %29 = vector.shape_cast %25 : vector<8x8xf32> to vector<1x8x8xf32>
    %30 = vector.shape_cast %26 : vector<8x8xf32> to vector<1x8x8xf32>
    %31 = vector.shape_cast %27 : vector<8x8xf32> to vector<1x8x8xf32>
    %32 = vector.shape_cast %28 : vector<8x8xf32> to vector<1x8x8xf32>
    %33 = tpu.concatenate %29, %30, %31, %32 in 0 : vector<1x8x8xf32>, vector<1x8x8xf32>, vector<1x8x8xf32>, vector<1x8x8xf32> -> vector<4x8x8xf32>
    %34 = vector.extract_strided_slice %11 {offsets = [0, 64], sizes = [8, 32], strides = [1, 1]} : vector<8x96xf32> to vector<8x32xf32>
    %35 = vector.extract_strided_slice %34 {offsets = [0, 0], sizes = [8, 8], strides = [1, 1]} : vector<8x32xf32> to vector<8x8xf32>
    %36 = vector.extract_strided_slice %34 {offsets = [0, 8], sizes = [8, 8], strides = [1, 1]} : vector<8x32xf32> to vector<8x8xf32>
    %37 = vector.extract_strided_slice %34 {offsets = [0, 16], sizes = [8, 8], strides = [1, 1]} : vector<8x32xf32> to vector<8x8xf32>
    %38 = vector.extract_strided_slice %34 {offsets = [0, 24], sizes = [8, 8], strides = [1, 1]} : vector<8x32xf32> to vector<8x8xf32>
    %39 = vector.shape_cast %35 : vector<8x8xf32> to vector<1x8x8xf32>
    %40 = vector.shape_cast %36 : vector<8x8xf32> to vector<1x8x8xf32>
    %41 = vector.shape_cast %37 : vector<8x8xf32> to vector<1x8x8xf32>
    %42 = vector.shape_cast %38 : vector<8x8xf32> to vector<1x8x8xf32>
    %43 = tpu.concatenate %39, %40, %41, %42 in 0 : vector<1x8x8xf32>, vector<1x8x8xf32>, vector<1x8x8xf32>, vector<1x8x8xf32> -> vector<4x8x8xf32>
    "tpu.trace_start"() <{level = 10 : i32, message = "hqd,hkd->hqk"}> : () -> ()
    %cst_9 = arith.constant dense<0.000000e+00> : vector<4x8x8xf32>
    %44 = tpu.matmul %23, %33, %cst_9 {dimension_numbers = #tpu.dot_dimension_numbers<[2], [2], [1], [1], [0, 0, 0, 1, 1, 1], [0], [0]>} : vector<4x8x8xf32>, vector<4x8x8xf32>, vector<4x8x8xf32> -> vector<4x8x8xf32>
    "tpu.trace_stop"() : () -> ()
    %cst_10 = arith.constant dense<0xFF800000> : vector<4x8xf32>
    %45 = vector.multi_reduction <maximumf>, %44, %cst_10 [2] : vector<4x8x8xf32> to vector<4x8xf32>
    %46 = vector.shape_cast %45 : vector<4x8xf32> to vector<4x8x1xf32>
    %47 = vector.broadcast %46 : vector<4x8x1xf32> to vector<4x8x8xf32>
    %48 = arith.subf %44, %47 : vector<4x8x8xf32>
    %49 = math.exp %48 : vector<4x8x8xf32>
    %cst_11 = arith.constant dense<0.000000e+00> : vector<4x8xf32>
    %50 = vector.multi_reduction <add>, %49, %cst_11 [2] : vector<4x8x8xf32> to vector<4x8xf32>
    %51 = vector.shape_cast %50 : vector<4x8xf32> to vector<4x8x1xf32>
    %52 = tpu.reciprocal %51 {approx = true} : vector<4x8x1xf32> -> vector<4x8x1xf32>
    %53 = vector.broadcast %52 : vector<4x8x1xf32> to vector<4x8x8xf32>
    %54 = arith.mulf %49, %53 : vector<4x8x8xf32>
    "tpu.trace_start"() <{level = 10 : i32, message = "hqk,hkd->hqd"}> : () -> ()
    %cst_12 = arith.constant dense<0.000000e+00> : vector<4x8x8xf32>
    %55 = tpu.matmul %54, %43, %cst_12 {dimension_numbers = #tpu.dot_dimension_numbers<[2], [1], [1], [2], [0, 0, 0, 1, 1, 2], [0], [0]>} : vector<4x8x8xf32>, vector<4x8x8xf32>, vector<4x8x8xf32> -> vector<4x8x8xf32>
    "tpu.trace_stop"() : () -> ()
    %56 = vector.extract_strided_slice %55 {offsets = [0, 0, 0], sizes = [1, 8, 8], strides = [1, 1, 1]} : vector<4x8x8xf32> to vector<1x8x8xf32>
    %57 = vector.shape_cast %56 : vector<1x8x8xf32> to vector<8x8xf32>
    %58 = vector.extract_strided_slice %55 {offsets = [1, 0, 0], sizes = [1, 8, 8], strides = [1, 1, 1]} : vector<4x8x8xf32> to vector<1x8x8xf32>
    %59 = vector.shape_cast %58 : vector<1x8x8xf32> to vector<8x8xf32>
    %60 = vector.extract_strided_slice %55 {offsets = [2, 0, 0], sizes = [1, 8, 8], strides = [1, 1, 1]} : vector<4x8x8xf32> to vector<1x8x8xf32>
    %61 = vector.shape_cast %60 : vector<1x8x8xf32> to vector<8x8xf32>
    %62 = vector.extract_strided_slice %55 {offsets = [3, 0, 0], sizes = [1, 8, 8], strides = [1, 1, 1]} : vector<4x8x8xf32> to vector<1x8x8xf32>
    %63 = vector.shape_cast %62 : vector<1x8x8xf32> to vector<8x8xf32>
    %64 = tpu.concatenate %57, %59, %61, %63 in 1 : vector<8x8xf32>, vector<8x8xf32>, vector<8x8xf32>, vector<8x8xf32> -> vector<8x32xf32>
    %c0_13 = arith.constant 0 : index
    %c0_14 = arith.constant 0 : index
    %c0_15 = arith.constant 0 : index
    %65 = vector.load %arg7[%c0_13, %c0_14, %c0_15] : memref<1x32x32xbf16, #tpu.memory_space<vmem>>, vector<1x32x32xbf16>
    %66 = vector.shape_cast %65 : vector<1x32x32xbf16> to vector<32x32xbf16>
    %67 = arith.truncf %64 : vector<8x32xf32> to vector<8x32xbf16>
    %cst_16 = arith.constant dense<0.000000e+00> : vector<8x32xf32>
    %68 = tpu.matmul %67, %66, %cst_16 {dimension_numbers = #tpu.dot_dimension_numbers<[1], [0], [0], [1], [0, 0, 1, 1], [], []>} : vector<8x32xbf16>, vector<32x32xbf16>, vector<8x32xf32> -> vector<8x32xf32>
    %c0_17 = arith.constant 0 : index
    %c0_18 = arith.constant 0 : index
    %c0_19 = arith.constant 0 : index
    %69 = vector.load %arg8[%c0_17, %c0_18, %c0_19] : memref<1x1x32xf32, #tpu.memory_space<vmem>>, vector<1x1x32xf32>
    %70 = vector.shape_cast %69 : vector<1x1x32xf32> to vector<1x32xf32>
    %71 = vector.broadcast %70 : vector<1x32xf32> to vector<8x32xf32>
    %72 = arith.addf %68, %71 : vector<8x32xf32>
    %73 = arith.addf %72, %3 : vector<8x32xf32>
    %c0_20 = arith.constant 0 : index
    %c0_21 = arith.constant 0 : index
    %c0_22 = arith.constant 0 : index
    %74 = vector.load %arg9[%c0_20, %c0_21, %c0_22] : memref<1x1x32xf32, #tpu.memory_space<vmem>>, vector<1x1x32xf32>
    %75 = vector.shape_cast %74 : vector<1x1x32xf32> to vector<1x32xf32>
    %c0_23 = arith.constant 0 : index
    %c0_24 = arith.constant 0 : index
    %c0_25 = arith.constant 0 : index
    %76 = vector.load %arg10[%c0_23, %c0_24, %c0_25] : memref<1x1x32xf32, #tpu.memory_space<vmem>>, vector<1x1x32xf32>
    %77 = vector.shape_cast %76 : vector<1x1x32xf32> to vector<1x32xf32>
    %cst_26 = arith.constant dense<0.000000e+00> : vector<8xf32>
    %78 = vector.multi_reduction <add>, %73, %cst_26 [1] : vector<8x32xf32> to vector<8xf32>
    %79 = vector.shape_cast %78 : vector<8xf32> to vector<8x1xf32>
    %cst_27 = arith.constant 3.200000e+01 : f32
    %80 = vector.broadcast %cst_27 : f32 to vector<8x1xf32>
    %81 = arith.divf %79, %80 : vector<8x1xf32>
    %82 = vector.broadcast %81 : vector<8x1xf32> to vector<8x32xf32>
    %83 = arith.subf %73, %82 : vector<8x32xf32>
    %84 = arith.mulf %83, %83 : vector<8x32xf32>
    %cst_28 = arith.constant dense<0.000000e+00> : vector<8xf32>
    %85 = vector.multi_reduction <add>, %84, %cst_28 [1] : vector<8x32xf32> to vector<8xf32>
    %86 = vector.shape_cast %85 : vector<8xf32> to vector<8x1xf32>
    %cst_29 = arith.constant 3.200000e+01 : f32
    %87 = vector.broadcast %cst_29 : f32 to vector<8x1xf32>
    %88 = arith.divf %86, %87 : vector<8x1xf32>
    %89 = vector.broadcast %81 : vector<8x1xf32> to vector<8x32xf32>
    %90 = arith.subf %73, %89 : vector<8x32xf32>
    %cst_30 = arith.constant 9.99999974E-6 : f32
    %91 = vector.broadcast %cst_30 : f32 to vector<8x1xf32>
    %92 = arith.addf %88, %91 : vector<8x1xf32>
    %93 = math.rsqrt %92 : vector<8x1xf32>
    %94 = vector.broadcast %93 : vector<8x1xf32> to vector<8x32xf32>
    %95 = arith.mulf %90, %94 : vector<8x32xf32>
    %96 = vector.broadcast %75 : vector<1x32xf32> to vector<8x32xf32>
    %97 = arith.mulf %95, %96 : vector<8x32xf32>
    %98 = vector.broadcast %77 : vector<1x32xf32> to vector<8x32xf32>
    %99 = arith.addf %97, %98 : vector<8x32xf32>
    %c0_31 = arith.constant 0 : index
    %c0_32 = arith.constant 0 : index
    %c0_33 = arith.constant 0 : index
    %100 = vector.load %arg11[%c0_31, %c0_32, %c0_33] : memref<1x32x64xbf16, #tpu.memory_space<vmem>>, vector<1x32x64xbf16>
    %101 = vector.shape_cast %100 : vector<1x32x64xbf16> to vector<32x64xbf16>
    %102 = arith.truncf %99 : vector<8x32xf32> to vector<8x32xbf16>
    %cst_34 = arith.constant dense<0.000000e+00> : vector<8x64xf32>
    %103 = tpu.matmul %102, %101, %cst_34 {dimension_numbers = #tpu.dot_dimension_numbers<[1], [0], [0], [1], [0, 0, 1, 1], [], []>} : vector<8x32xbf16>, vector<32x64xbf16>, vector<8x64xf32> -> vector<8x64xf32>
    %c0_35 = arith.constant 0 : index
    %c0_36 = arith.constant 0 : index
    %c0_37 = arith.constant 0 : index
    %104 = vector.load %arg12[%c0_35, %c0_36, %c0_37] : memref<1x1x64xf32, #tpu.memory_space<vmem>>, vector<1x1x64xf32>
    %105 = vector.shape_cast %104 : vector<1x1x64xf32> to vector<1x64xf32>
    %106 = vector.broadcast %105 : vector<1x64xf32> to vector<8x64xf32>
    %107 = arith.addf %103, %106 : vector<8x64xf32>
    %108 = arith.mulf %107, %107 : vector<8x64xf32>
    %109 = arith.mulf %107, %108 : vector<8x64xf32>
    %cst_38 = arith.constant 4.471500e-02 : f32
    %110 = vector.broadcast %cst_38 : f32 to vector<8x64xf32>
    %111 = arith.mulf %110, %109 : vector<8x64xf32>
    %112 = arith.addf %107, %111 : vector<8x64xf32>
    %cst_39 = arith.constant 0.797884583 : f32
    %113 = vector.broadcast %cst_39 : f32 to vector<8x64xf32>
    %114 = arith.mulf %113, %112 : vector<8x64xf32>
    %115 = math.tanh %114 : vector<8x64xf32>
    %cst_40 = arith.constant 1.000000e+00 : f32
    %116 = vector.broadcast %cst_40 : f32 to vector<8x64xf32>
    %117 = arith.addf %116, %115 : vector<8x64xf32>
    %cst_41 = arith.constant 5.000000e-01 : f32
    %118 = vector.broadcast %cst_41 : f32 to vector<8x64xf32>
    %119 = arith.mulf %118, %117 : vector<8x64xf32>
    %120 = arith.mulf %107, %119 : vector<8x64xf32>
    %c0_42 = arith.constant 0 : index
    %c0_43 = arith.constant 0 : index
    %c0_44 = arith.constant 0 : index
    %121 = vector.load %arg13[%c0_42, %c0_43, %c0_44] : memref<1x64x32xbf16, #tpu.memory_space<vmem>>, vector<1x64x32xbf16>
    %122 = vector.shape_cast %121 : vector<1x64x32xbf16> to vector<64x32xbf16>
    %123 = arith.truncf %120 : vector<8x64xf32> to vector<8x64xbf16>
    %cst_45 = arith.constant dense<0.000000e+00> : vector<8x32xf32>
    %124 = tpu.matmul %123, %122, %cst_45 {dimension_numbers = #tpu.dot_dimension_numbers<[1], [0], [0], [1], [0, 0, 1, 1], [], []>} : vector<8x64xbf16>, vector<64x32xbf16>, vector<8x32xf32> -> vector<8x32xf32>
    %c0_46 = arith.constant 0 : index
    %c0_47 = arith.constant 0 : index
    %c0_48 = arith.constant 0 : index
    %125 = vector.load %arg14[%c0_46, %c0_47, %c0_48] : memref<1x1x32xf32, #tpu.memory_space<vmem>>, vector<1x1x32xf32>
    %126 = vector.shape_cast %125 : vector<1x1x32xf32> to vector<1x32xf32>
    %127 = vector.broadcast %126 : vector<1x32xf32> to vector<8x32xf32>
    %128 = arith.addf %124, %127 : vector<8x32xf32>
    %129 = arith.addf %128, %99 : vector<8x32xf32>
    %c0_49 = arith.constant 0 : index
    %c0_50 = arith.constant 0 : index
    %c0_51 = arith.constant 0 : index
    %130 = vector.load %arg15[%c0_49, %c0_50, %c0_51] : memref<1x1x32xf32, #tpu.memory_space<vmem>>, vector<1x1x32xf32>
    %131 = vector.shape_cast %130 : vector<1x1x32xf32> to vector<1x32xf32>
    %c0_52 = arith.constant 0 : index
    %c0_53 = arith.constant 0 : index
    %c0_54 = arith.constant 0 : index
    %132 = vector.load %arg16[%c0_52, %c0_53, %c0_54] : memref<1x1x32xf32, #tpu.memory_space<vmem>>, vector<1x1x32xf32>
    %133 = vector.shape_cast %132 : vector<1x1x32xf32> to vector<1x32xf32>
    %cst_55 = arith.constant dense<0.000000e+00> : vector<8xf32>
    %134 = vector.multi_reduction <add>, %129, %cst_55 [1] : vector<8x32xf32> to vector<8xf32>
    %135 = vector.shape_cast %134 : vector<8xf32> to vector<8x1xf32>
    %cst_56 = arith.constant 3.200000e+01 : f32
    %136 = vector.broadcast %cst_56 : f32 to vector<8x1xf32>
    %137 = arith.divf %135, %136 : vector<8x1xf32>
    %138 = vector.broadcast %137 : vector<8x1xf32> to vector<8x32xf32>
    %139 = arith.subf %129, %138 : vector<8x32xf32>
    %140 = arith.mulf %139, %139 : vector<8x32xf32>
    %cst_57 = arith.constant dense<0.000000e+00> : vector<8xf32>
    %141 = vector.multi_reduction <add>, %140, %cst_57 [1] : vector<8x32xf32> to vector<8xf32>
    %142 = vector.shape_cast %141 : vector<8xf32> to vector<8x1xf32>
    %cst_58 = arith.constant 3.200000e+01 : f32
    %143 = vector.broadcast %cst_58 : f32 to vector<8x1xf32>
    %144 = arith.divf %142, %143 : vector<8x1xf32>
    %145 = vector.broadcast %137 : vector<8x1xf32> to vector<8x32xf32>
    %146 = arith.subf %129, %145 : vector<8x32xf32>
    %cst_59 = arith.constant 9.99999974E-6 : f32
    %147 = vector.broadcast %cst_59 : f32 to vector<8x1xf32>
    %148 = arith.addf %144, %147 : vector<8x1xf32>
    %149 = math.rsqrt %148 : vector<8x1xf32>
    %150 = vector.broadcast %149 : vector<8x1xf32> to vector<8x32xf32>
    %151 = arith.mulf %146, %150 : vector<8x32xf32>
    %152 = vector.broadcast %131 : vector<1x32xf32> to vector<8x32xf32>
    %153 = arith.mulf %151, %152 : vector<8x32xf32>
    %154 = vector.broadcast %133 : vector<1x32xf32> to vector<8x32xf32>
    %155 = arith.addf %153, %154 : vector<8x32xf32>
    %c0_60 = arith.constant 0 : index
    %c0_61 = arith.constant 0 : index
    %156 = vector.load %arg21[%c0_60, %c0_61] : memref<8x32xf32, #tpu.memory_space<vmem>>, vector<8x32xf32>
    tpu.vector_store %arg21[%c0_60, %c0_61], %155 {strides = array<i32>} : memref<8x32xf32, #tpu.memory_space<vmem>>, vector<8x32xf32>,
    %c1_i32 = arith.constant 1 : i32
    %157 = arith.cmpi eq, %arg1, %c1_i32 : i32
    %158 = arith.extui %157 : i1 to i32
    %c0_i32_62 = arith.constant 0 : i32
    %159 = arith.cmpi ne, %158, %c0_i32_62 : i32
    scf.if %159 {
      %160 = vector.shape_cast %155 : vector<8x32xf32> to vector<1x8x32xf32>
      %c0_63 = arith.constant 0 : index
      %c0_64 = arith.constant 0 : index
      %c0_65 = arith.constant 0 : index
      %161 = vector.load %arg19[%c0_63, %c0_64, %c0_65] : memref<1x8x32xf32, #tpu.memory_space<vmem>>, vector<1x8x32xf32>
      tpu.vector_store %arg19[%c0_63, %c0_64, %c0_65], %160 {strides = array<i32>} : memref<1x8x32xf32, #tpu.memory_space<vmem>>, vector<1x8x32xf32>,
      %162 = vector.extract_strided_slice %155 {offsets = [0, 0], sizes = [1, 32], strides = [1, 1]} : vector<8x32xf32> to vector<1x32xf32>
      %c0_66 = arith.constant 0 : index
      %c0_67 = arith.constant 0 : index
      %163 = vector.load %arg17[%c0_66, %c0_67] : memref<32x32xbf16, #tpu.memory_space<vmem>>, vector<32x32xbf16>
      %164 = arith.truncf %162 : vector<1x32xf32> to vector<1x32xbf16>
      %cst_68 = arith.constant dense<0.000000e+00> : vector<1x32xf32>
      %165 = tpu.matmul %164, %163, %cst_68 {dimension_numbers = #tpu.dot_dimension_numbers<[1], [0], [0], [1], [0, 0, 1, 1], [], []>} : vector<1x32xbf16>, vector<32x32xbf16>, vector<1x32xf32> -> vector<1x32xf32>
      %c0_69 = arith.constant 0 : index
      %c0_70 = arith.constant 0 : index
      %166 = vector.load %arg18[%c0_69, %c0_70] : memref<1x32xf32, #tpu.memory_space<vmem>>, vector<1x32xf32>
      %167 = arith.addf %165, %166 : vector<1x32xf32>
      %168 = math.tanh %167 : vector<1x32xf32>
      %169 = vector.shape_cast %168 : vector<1x32xf32> to vector<1x1x32xf32>
      %c0_71 = arith.constant 0 : index
      %c0_72 = arith.constant 0 : index
      %c0_73 = arith.constant 0 : index
      %170 = vector.load %arg20[%c0_71, %c0_72, %c0_73] : memref<1x1x32xf32, #tpu.memory_space<vmem>>, vector<1x1x32xf32>
      tpu.vector_store %arg20[%c0_71, %c0_72, %c0_73], %169 {strides = array<i32>} : memref<1x1x32xf32, #tpu.memory_space<vmem>>, vector<1x1x32xf32>,
    } else {
    }
    return
  }
  func.func @transform_0(%arg0: i32, %arg1: i32) -> (i32, i32, i32) {
    %c0_i32 = arith.constant 0 : i32
    %c0_i32_0 = arith.constant 0 : i32
    %c0_i32_1 = arith.constant 0 : i32
    return %arg0, %c0_i32, %c0_i32_0 : i32, i32, i32
  }
  func.func @transform_1(%arg0: i32, %arg1: i32) -> (i32, i32) {
    %c0_i32 = arith.constant 0 : i32
    %c0_i32_0 = arith.constant 0 : i32
    %c0_i32_1 = arith.constant 0 : i32
    return %c0_i32, %c0_i32_0 : i32, i32
  }
  func.func @transform_2(%arg0: i32, %arg1: i32) -> (i32, i32) {
    %c0_i32 = arith.constant 0 : i32
    %c0_i32_0 = arith.constant 0 : i32
    %c0_i32_1 = arith.constant 0 : i32
    return %c0_i32, %c0_i32_0 : i32, i32
  }
  func.func @transform_3(%arg0: i32, %arg1: i32) -> (i32, i32, i32) {
    %c0_i32 = arith.constant 0 : i32
    %c0_i32_0 = arith.constant 0 : i32
    %c0_i32_1 = arith.constant 0 : i32
    return %arg1, %c0_i32, %c0_i32_0 : i32, i32, i32
  }
  func.func @transform_4(%arg0: i32, %arg1: i32) -> (i32, i32, i32) {
    %c0_i32 = arith.constant 0 : i32
    %c0_i32_0 = arith.constant 0 : i32
    %c0_i32_1 = arith.constant 0 : i32
    return %arg1, %c0_i32, %c0_i32_0 : i32, i32, i32
  }
  func.func @transform_5(%arg0: i32, %arg1: i32) -> (i32, i32, i32) {
    %c0_i32 = arith.constant 0 : i32
    %c0_i32_0 = arith.constant 0 : i32
    %c0_i32_1 = arith.constant 0 : i32
    return %arg1, %c0_i32, %c0_i32_0 : i32, i32, i32
  }
  func.func @transform_6(%arg0: i32, %arg1: i32) -> (i32, i32, i32) {
    %c0_i32 = arith.constant 0 : i32
    %c0_i32_0 = arith.constant 0 : i32
    %c0_i32_1 = arith.constant 0 : i32
    return %arg1, %c0_i32, %c0_i32_0 : i32, i32, i32
  }
  func.func @transform_7(%arg0: i32, %arg1: i32) -> (i32, i32, i32) {
    %c0_i32 = arith.constant 0 : i32
    %c0_i32_0 = arith.constant 0 : i32
    %c0_i32_1 = arith.constant 0 : i32
    return %arg1, %c0_i32, %c0_i32_0 : i32, i32, i32
  }
  func.func @transform_8(%arg0: i32, %arg1: i32) -> (i32, i32, i32) {
    %c0_i32 = arith.constant 0 : i32
    %c0_i32_0 = arith.constant 0 : i32
    %c0_i32_1 = arith.constant 0 : i32
    return %arg1, %c0_i32, %c0_i32_0 : i32, i32, i32
  }
  func.func @transform_9(%arg0: i32, %arg1: i32) -> (i32, i32, i32) {
    %c0_i32 = arith.constant 0 : i32
    %c0_i32_0 = arith.constant 0 : i32
    %c0_i32_1 = arith.constant 0 : i32
    return %arg1, %c0_i32, %c0_i32_0 : i32, i32, i32
  }
  func.func @transform_10(%arg0: i32, %arg1: i32) -> (i32, i32, i32) {
    %c0_i32 = arith.constant 0 : i32
    %c0_i32_0 = arith.constant 0 : i32
    %c0_i32_1 = arith.constant 0 : i32
    return %arg1, %c0_i32, %c0_i32_0 : i32, i32, i32
  }
  func.func @transform_11(%arg0: i32, %arg1: i32) -> (i32, i32, i32) {
    %c0_i32 = arith.constant 0 : i32
    %c0_i32_0 = arith.constant 0 : i32
    %c0_i32_1 = arith.constant 0 : i32
    return %arg1, %c0_i32, %c0_i32_0 : i32, i32, i32
  }
  func.func @transform_12(%arg0: i32, %arg1: i32) -> (i32, i32, i32) {
    %c0_i32 = arith.constant 0 : i32
    %c0_i32_0 = arith.constant 0 : i32
    %c0_i32_1 = arith.constant 0 : i32
    return %arg1, %c0_i32, %c0_i32_0 : i32, i32, i32
  }
  func.func @transform_13(%arg0: i32, %arg1: i32) -> (i32, i32, i32) {
    %c0_i32 = arith.constant 0 : i32
    %c0_i32_0 = arith.constant 0 : i32
    %c0_i32_1 = arith.constant 0 : i32
    return %arg1, %c0_i32, %c0_i32_0 : i32, i32, i32
  }
  func.func @transform_14(%arg0: i32, %arg1: i32) -> (i32, i32, i32) {
    %c0_i32 = arith.constant 0 : i32
    %c0_i32_0 = arith.constant 0 : i32
    %c0_i32_1 = arith.constant 0 : i32
    return %arg1, %c0_i32, %c0_i32_0 : i32, i32, i32
  }
  func.func @transform_15(%arg0: i32, %arg1: i32) -> (i32, i32) {
    %c0_i32 = arith.constant 0 : i32
    %c0_i32_0 = arith.constant 0 : i32
    %c0_i32_1 = arith.constant 0 : i32
    return %c0_i32, %c0_i32_0 : i32, i32
  }
  func.func @transform_16(%arg0: i32, %arg1: i32) -> (i32, i32) {
    %c0_i32 = arith.constant 0 : i32
    %c0_i32_0 = arith.constant 0 : i32
    %c0_i32_1 = arith.constant 0 : i32
    return %c0_i32, %c0_i32_0 : i32, i32
  }
  func.func @transform_17(%arg0: i32, %arg1: i32) -> (i32, i32, i32) {
    %c0_i32 = arith.constant 0 : i32
    %c0_i32_0 = arith.constant 0 : i32
    %c0_i32_1 = arith.constant 0 : i32
    return %arg0, %c0_i32, %c0_i32_0 : i32, i32, i32
  }
  func.func @transform_18(%arg0: i32, %arg1: i32) -> (i32, i32, i32) {
    %c0_i32 = arith.constant 0 : i32
    %c0_i32_0 = arith.constant 0 : i32
    %c0_i32_1 = arith.constant 0 : i32
    return %arg0, %c0_i32, %c0_i32_0 : i32, i32, i32
  }
}

</mosaic_0001>

<llo_original>
// kernel: backbone_forward.1
$region0: #{backbone_forward.1}
  #allocation0 [shape = 'u32[]', space=smem, size = 0x4, offset = 0x4, fixed_abs, tag = 'smem constant byte address 0x4 - core index']
  #allocation1 [shape = 'u32[144,128]{1,0:T(1,128)}', space=vmem, size = 0x12000, scoped, tag = 'internal scratch']
  #allocation2 [shape = 'f32[8,32]{1,0:T(8,128)}', space=vmem, size = 0x1000, scoped, tag = 'scratch operand']
  %s0 = inlined_call_operand.vmem [shape: bf16[2,8,32], index: 0, kind: input, shape index: {}]
  %s1 = inlined_call_operand.vmem [shape: f32[1,32], index: 1, kind: input, shape index: {}]
  %s2 = inlined_call_operand.vmem [shape: f32[1,32], index: 2, kind: input, shape index: {}]
  %s3 = inlined_call_operand.vmem [shape: bf16[2,32,96], index: 3, kind: input, shape index: {}]
  %s4 = inlined_call_operand.vmem [shape: f32[2,1,96], index: 4, kind: input, shape index: {}]
  %s5 = inlined_call_operand.vmem [shape: bf16[2,32,32], index: 5, kind: input, shape index: {}]
  %s6 = inlined_call_operand.vmem [shape: f32[2,1,32], index: 6, kind: input, shape index: {}]
  %s7 = inlined_call_operand.vmem [shape: f32[2,1,32], index: 7, kind: input, shape index: {}]
  %s8 = inlined_call_operand.vmem [shape: f32[2,1,32], index: 8, kind: input, shape index: {}]
  %s9 = inlined_call_operand.vmem [shape: bf16[2,32,64], index: 9, kind: input, shape index: {}]
  %s10 = inlined_call_operand.vmem [shape: f32[2,1,64], index: 10, kind: input, shape index: {}]
  %s11 = inlined_call_operand.vmem [shape: bf16[2,64,32], index: 11, kind: input, shape index: {}]
  %s12 = inlined_call_operand.vmem [shape: f32[2,1,32], index: 12, kind: input, shape index: {}]
  %s13 = inlined_call_operand.vmem [shape: f32[2,1,32], index: 13, kind: input, shape index: {}]
  %s14 = inlined_call_operand.vmem [shape: f32[2,1,32], index: 14, kind: input, shape index: {}]
  %s15 = inlined_call_operand.vmem [shape: bf16[32,32], index: 15, kind: input, shape index: {}]
  %s16 = inlined_call_operand.vmem [shape: f32[1,32], index: 16, kind: input, shape index: {}]
  %s17 = inlined_call_operand.hbm [shape: f32[2,8,32], index: 17, kind: output, shape index: {0}]
  %s18 = inlined_call_operand.hbm [shape: f32[2,1,32], index: 18, kind: output, shape index: {1}]
  %19 = xla_tuple %s17, %s18
  %s20 = sld [smem:[#allocation0]]
  $region117: #{backbone_forward.1} parent=0
    _
  %s22 = ssub.s32 1, %s20
  %s23 = scalar_select 0, %s22, %s20
  $region1: #{backbone_forward.1} parent=0
    #allocation3 [shape = 'u8[8192]{0}', space=vmem, size = 0x2000, scoped, tag = 'output window, operand 0']
    #allocation4 [shape = 's32[2]{0}', space=sflag, size = 0x8, scoped, tag = 'scoped memory for backbone_forward.1']
    #allocation5 [shape = 'u8[1024]{0}', space=vmem, size = 0x400, scoped, tag = 'output window, operand 1']
    #allocation6 [shape = 's32[2]{0}', space=sflag, size = 0x8, scoped, tag = 'scoped memory for backbone_forward.1']
    %24 = vsyncpa [#allocation4], 0
    %s25 = scalar_lea.sflag [#allocation4], 1
    %26 = vsyncpa %s25, 0
    %27 = vsyncpa [#allocation6], 0
    %s28 = scalar_lea.sflag [#allocation6], 1
    %29 = vsyncpa %s28, 0
    loop: start=0, step=1, limit=6
    $region2: #{backbone_forward.1} parent=1 // loop_pre_header
      _
    $region3: #{backbone_forward.1} parent=1 // loop_header
      %s31 = sphi 0, %s35
      %p32 = scmp.ge.s32.totalorder %s31, 6
      %s38 = sphi 0, %s50
      %s39 = sphi 0, %s46
      %s40 = sphi 0, %s38
      %s41 = sphi 0, %s39
      %s42 = sphi 0, %s40
      %s43 = sphi 0, %s41
      %s53 = sphi 0, %s55
      %s56 = sphi 0, %s53
      %s57 = sphi 0, %s56
      %s73 = sphi 0, %s57
      %s77 = sphi 0, %s77
      %s79 = sphi 0, %s77
      %s80 = sphi 0, %s79
      %s94 = sphi 0, %s80
      %s98 = sphi 0, %s98
      %s100 = sphi 0, %s98
      %s101 = sphi 0, %s100
      %s115 = sphi 0, %s101
      %s121 = sphi 0, %s123
      %s124 = sphi 0, %s121
      %s125 = sphi 0, %s124
      %s141 = sphi 0, %s125
      %s147 = sphi 0, %s149
      %s150 = sphi 0, %s147
      %s151 = sphi 0, %s150
      %s167 = sphi 0, %s151
      %s173 = sphi 0, %s175
      %s176 = sphi 0, %s173
      %s177 = sphi 0, %s176
      %s193 = sphi 0, %s177
      %s199 = sphi 0, %s201
      %s202 = sphi 0, %s199
      %s203 = sphi 0, %s202
      %s219 = sphi 0, %s203
      %s225 = sphi 0, %s227
      %s228 = sphi 0, %s225
      %s229 = sphi 0, %s228
      %s245 = sphi 0, %s229
      %s251 = sphi 0, %s253
      %s254 = sphi 0, %s251
      %s255 = sphi 0, %s254
      %s271 = sphi 0, %s255
      %s277 = sphi 0, %s279
      %s280 = sphi 0, %s277
      %s281 = sphi 0, %s280
      %s297 = sphi 0, %s281
      %s303 = sphi 0, %s305
      %s306 = sphi 0, %s303
      %s307 = sphi 0, %s306
      %s323 = sphi 0, %s307
      %s329 = sphi 0, %s331
      %s332 = sphi 0, %s329
      %s333 = sphi 0, %s332
      %s349 = sphi 0, %s333
      %s355 = sphi 0, %s357
      %s358 = sphi 0, %s355
      %s359 = sphi 0, %s358
      %s375 = sphi 0, %s359
      %s381 = sphi 0, %s383
      %s384 = sphi 0, %s381
      %s385 = sphi 0, %s384
      %s401 = sphi 0, %s385
      %s407 = sphi 0, %s409
      %s410 = sphi 0, %s407
      %s411 = sphi 0, %s410
      %s427 = sphi 0, %s411
      %s431 = sphi 0, %s431
      %s433 = sphi 0, %s431
      %s434 = sphi 0, %s433
      %s448 = sphi 0, %s434
      %s452 = sphi 0, %s452
      %s454 = sphi 0, %s452
      %s455 = sphi 0, %s454
      %s469 = sphi 0, %s455
      %s475 = sphi 0, %s477
      %s478 = sphi 0, %s475
      %s479 = sphi 0, %s478
      %s495 = sphi 0, %s479
      %s501 = sphi 0, %s503
      %s504 = sphi 0, %s501
      %s505 = sphi 0, %s504
      %s521 = sphi 0, %s505
    $region4: #{backbone_forward.1} parent=1 // loop_header_branch
      %34 = sbr.rel (%p32) target = $region8
    $region5: #{backbone_forward.1} parent=1 // loop_body
      %s36 = ssub.s32 %s31, 1
      %s37 = ssub.s32 %s31, 2
      %s44 = sadd.s32 1, %s39
      %p45 = scmp.ge.s32.totalorder %s44, 2
      %s46 = scalar_select %p45, 0, %s44
      %s47 = sadd.s32 1, %s38
      %s48 = scalar_select %p45, %s47, %s38
      %p49 = scmp.ge.s32.totalorder %s48, 2
      %s50 = scalar_select %p49, 0, %s48
      %s51 = ssub.s32 %s38, %s50
      %p52 = scmp.eq.s32.totalorder %s51, 0
      %s54 = sadd.s32 %s53, 1
      %s55 = scalar_select %p52, %s53, %s54
      %p58 = pneg %p52
      %p59 = scmp.eq.s32.totalorder %s31, 3
      %p60 = por %p58, %p59
      %p61 = scmp.ne.s32.totalorder %s53, %s56
      %p62 = scmp.eq.s32.totalorder %s31, 0
      %p63 = por %p61, %p62
      %p64 = scmp.ne.s32.totalorder %s53, %s56
      %p65 = scmp.eq.s32.totalorder %s36, 3
      %p66 = por %p64, %p65
      %p67 = scmp.ne.s32.totalorder %s56, %s57
      %p68 = scmp.eq.s32.totalorder %s36, 0
      %p69 = por %p67, %p68
      %p70 = scmp.ne.s32.totalorder %s56, %s57
      %p71 = scmp.eq.s32.totalorder %s37, 3
      %p72 = por %p70, %p71
      %p74 = scmp.ne.s32.totalorder %s57, %s73
      %p75 = scmp.eq.s32.totalorder %s37, 0
      %p76 = por %p74, %p75
      %s78 = sadd.s32 %s77, 1
      %p81 = scmp.eq.s32.totalorder %s31, 3
      %p82 = scmp.ne.s32.totalorder %s77, %s79
      %p83 = scmp.eq.s32.totalorder %s31, 0
      %p84 = por %p82, %p83
      %p85 = scmp.ne.s32.totalorder %s77, %s79
      %p86 = scmp.eq.s32.totalorder %s36, 3
      %p87 = por %p85, %p86
      %p88 = scmp.ne.s32.totalorder %s79, %s80
      %p89 = scmp.eq.s32.totalorder %s36, 0
      %p90 = por %p88, %p89
      %p91 = scmp.ne.s32.totalorder %s79, %s80
      %p92 = scmp.eq.s32.totalorder %s37, 3
      %p93 = por %p91, %p92
      %p95 = scmp.ne.s32.totalorder %s80, %s94
      %p96 = scmp.eq.s32.totalorder %s37, 0
      %p97 = por %p95, %p96
      %s99 = sadd.s32 %s98, 1
      %p102 = scmp.eq.s32.totalorder %s31, 3
      %p103 = scmp.ne.s32.totalorder %s98, %s100
      %p104 = scmp.eq.s32.totalorder %s31, 0
      %p105 = por %p103, %p104
      %p106 = scmp.ne.s32.totalorder %s98, %s100
      %p107 = scmp.eq.s32.totalorder %s36, 3
      %p108 = por %p106, %p107
      %p109 = scmp.ne.s32.totalorder %s100, %s101
      %p110 = scmp.eq.s32.totalorder %s36, 0
      %p111 = por %p109, %p110
      %p112 = scmp.ne.s32.totalorder %s100, %s101
      %p113 = scmp.eq.s32.totalorder %s37, 3
      %p114 = por %p112, %p113
      %p116 = scmp.ne.s32.totalorder %s101, %s115
      %p117 = scmp.eq.s32.totalorder %s37, 0
      %p118 = por %p116, %p117
      %s119 = ssub.s32 %s39, %s46
      %p120 = scmp.eq.s32.totalorder %s119, 0
      %s122 = sadd.s32 %s121, 1
      %s123 = scalar_select %p120, %s121, %s122
      %p126 = pneg %p120
      %p127 = scmp.eq.s32.totalorder %s31, 3
      %p128 = por %p126, %p127
      %p129 = scmp.ne.s32.totalorder %s121, %s124
      %p130 = scmp.eq.s32.totalorder %s31, 0
      %p131 = por %p129, %p130
      %p132 = scmp.ne.s32.totalorder %s121, %s124
      %p133 = scmp.eq.s32.totalorder %s36, 3
      %p134 = por %p132, %p133
      %p135 = scmp.ne.s32.totalorder %s124, %s125
      %p136 = scmp.eq.s32.totalorder %s36, 0
      %p137 = por %p135, %p136
      %p138 = scmp.ne.s32.totalorder %s124, %s125
      %p139 = scmp.eq.s32.totalorder %s37, 3
      %p140 = por %p138, %p139
      %p142 = scmp.ne.s32.totalorder %s125, %s141
      %p143 = scmp.eq.s32.totalorder %s37, 0
      %p144 = por %p142, %p143
      %s145 = ssub.s32 %s39, %s46
      %p146 = scmp.eq.s32.totalorder %s145, 0
      %s148 = sadd.s32 %s147, 1
      %s149 = scalar_select %p146, %s147, %s148
      %p152 = pneg %p146
      %p153 = scmp.eq.s32.totalorder %s31, 3
      %p154 = por %p152, %p153
      %p155 = scmp.ne.s32.totalorder %s147, %s150
      %p156 = scmp.eq.s32.totalorder %s31, 0
      %p157 = por %p155, %p156
      %p158 = scmp.ne.s32.totalorder %s147, %s150
      %p159 = scmp.eq.s32.totalorder %s36, 3
      %p160 = por %p158, %p159
      %p161 = scmp.ne.s32.totalorder %s150, %s151
      %p162 = scmp.eq.s32.totalorder %s36, 0
      %p163 = por %p161, %p162
      %p164 = scmp.ne.s32.totalorder %s150, %s151
      %p165 = scmp.eq.s32.totalorder %s37, 3
      %p166 = por %p164, %p165
      %p168 = scmp.ne.s32.totalorder %s151, %s167
      %p169 = scmp.eq.s32.totalorder %s37, 0
      %p170 = por %p168, %p169
      %s171 = ssub.s32 %s39, %s46
      %p172 = scmp.eq.s32.totalorder %s171, 0
      %s174 = sadd.s32 %s173, 1
      %s175 = scalar_select %p172, %s173, %s174
      %p178 = pneg %p172
      %p179 = scmp.eq.s32.totalorder %s31, 3
      %p180 = por %p178, %p179
      %p181 = scmp.ne.s32.totalorder %s173, %s176
      %p182 = scmp.eq.s32.totalorder %s31, 0
      %p183 = por %p181, %p182
      %p184 = scmp.ne.s32.totalorder %s173, %s176
      %p185 = scmp.eq.s32.totalorder %s36, 3
      %p186 = por %p184, %p185
      %p187 = scmp.ne.s32.totalorder %s176, %s177
      %p188 = scmp.eq.s32.totalorder %s36, 0
      %p189 = por %p187, %p188
      %p190 = scmp.ne.s32.totalorder %s176, %s177
      %p191 = scmp.eq.s32.totalorder %s37, 3
      %p192 = por %p190, %p191
      %p194 = scmp.ne.s32.totalorder %s177, %s193
      %p195 = scmp.eq.s32.totalorder %s37, 0
      %p196 = por %p194, %p195
      %s197 = ssub.s32 %s39, %s46
      %p198 = scmp.eq.s32.totalorder %s197, 0
      %s200 = sadd.s32 %s199, 1
      %s201 = scalar_select %p198, %s199, %s200
      %p204 = pneg %p198
      %p205 = scmp.eq.s32.totalorder %s31, 3
      %p206 = por %p204, %p205
      %p207 = scmp.ne.s32.totalorder %s199, %s202
      %p208 = scmp.eq.s32.totalorder %s31, 0
      %p209 = por %p207, %p208
      %p210 = scmp.ne.s32.totalorder %s199, %s202
      %p211 = scmp.eq.s32.totalorder %s36, 3
      %p212 = por %p210, %p211
      %p213 = scmp.ne.s32.totalorder %s202, %s203
      %p214 = scmp.eq.s32.totalorder %s36, 0
      %p215 = por %p213, %p214
      %p216 = scmp.ne.s32.totalorder %s202, %s203
      %p217 = scmp.eq.s32.totalorder %s37, 3
      %p218 = por %p216, %p217
      %p220 = scmp.ne.s32.totalorder %s203, %s219
      %p221 = scmp.eq.s32.totalorder %s37, 0
      %p222 = por %p220, %p221
      %s223 = ssub.s32 %s39, %s46
      %p224 = scmp.eq.s32.totalorder %s223, 0
      %s226 = sadd.s32 %s225, 1
      %s227 = scalar_select %p224, %s225, %s226
      %p230 = pneg %p224
      %p231 = scmp.eq.s32.totalorder %s31, 3
      %p232 = por %p230, %p231
      %p233 = scmp.ne.s32.totalorder %s225, %s228
      %p234 = scmp.eq.s32.totalorder %s31, 0
      %p235 = por %p233, %p234
      %p236 = scmp.ne.s32.totalorder %s225, %s228
      %p237 = scmp.eq.s32.totalorder %s36, 3
      %p238 = por %p236, %p237
      %p239 = scmp.ne.s32.totalorder %s228, %s229
      %p240 = scmp.eq.s32.totalorder %s36, 0
      %p241 = por %p239, %p240
      %p242 = scmp.ne.s32.totalorder %s228, %s229
      %p243 = scmp.eq.s32.totalorder %s37, 3
      %p244 = por %p242, %p243
      %p246 = scmp.ne.s32.totalorder %s229, %s245
      %p247 = scmp.eq.s32.totalorder %s37, 0
      %p248 = por %p246, %p247
      %s249 = ssub.s32 %s39, %s46
      %p250 = scmp.eq.s32.totalorder %s249, 0
      %s252 = sadd.s32 %s251, 1
      %s253 = scalar_select %p250, %s251, %s252
      %p256 = pneg %p250
      %p257 = scmp.eq.s32.totalorder %s31, 3
      %p258 = por %p256, %p257
      %p259 = scmp.ne.s32.totalorder %s251, %s254
      %p260 = scmp.eq.s32.totalorder %s31, 0
      %p261 = por %p259, %p260
      %p262 = scmp.ne.s32.totalorder %s251, %s254
      %p263 = scmp.eq.s32.totalorder %s36, 3
      %p264 = por %p262, %p263
      %p265 = scmp.ne.s32.totalorder %s254, %s255
      %p266 = scmp.eq.s32.totalorder %s36, 0
      %p267 = por %p265, %p266
      %p268 = scmp.ne.s32.totalorder %s254, %s255
      %p269 = scmp.eq.s32.totalorder %s37, 3
      %p270 = por %p268, %p269
      %p272 = scmp.ne.s32.totalorder %s255, %s271
      %p273 = scmp.eq.s32.totalorder %s37, 0
      %p274 = por %p272, %p273
      %s275 = ssub.s32 %s39, %s46
      %p276 = scmp.eq.s32.totalorder %s275, 0
      %s278 = sadd.s32 %s277, 1
      %s279 = scalar_select %p276, %s277, %s278
      %p282 = pneg %p276
      %p283 = scmp.eq.s32.totalorder %s31, 3
      %p284 = por %p282, %p283
      %p285 = scmp.ne.s32.totalorder %s277, %s280
      %p286 = scmp.eq.s32.totalorder %s31, 0
      %p287 = por %p285, %p286
      %p288 = scmp.ne.s32.totalorder %s277, %s280
      %p289 = scmp.eq.s32.totalorder %s36, 3
      %p290 = por %p288, %p289
      %p291 = scmp.ne.s32.totalorder %s280, %s281
      %p292 = scmp.eq.s32.totalorder %s36, 0
      %p293 = por %p291, %p292
      %p294 = scmp.ne.s32.totalorder %s280, %s281
      %p295 = scmp.eq.s32.totalorder %s37, 3
      %p296 = por %p294, %p295
      %p298 = scmp.ne.s32.totalorder %s281, %s297
      %p299 = scmp.eq.s32.totalorder %s37, 0
      %p300 = por %p298, %p299
      %s301 = ssub.s32 %s39, %s46
      %p302 = scmp.eq.s32.totalorder %s301, 0
      %s304 = sadd.s32 %s303, 1
      %s305 = scalar_select %p302, %s303, %s304
      %p308 = pneg %p302
      %p309 = scmp.eq.s32.totalorder %s31, 3
      %p310 = por %p308, %p309
      %p311 = scmp.ne.s32.totalorder %s303, %s306
      %p312 = scmp.eq.s32.totalorder %s31, 0
      %p313 = por %p311, %p312
      %p314 = scmp.ne.s32.totalorder %s303, %s306
      %p315 = scmp.eq.s32.totalorder %s36, 3
      %p316 = por %p314, %p315
      %p317 = scmp.ne.s32.totalorder %s306, %s307
      %p318 = scmp.eq.s32.totalorder %s36, 0
      %p319 = por %p317, %p318
      %p320 = scmp.ne.s32.totalorder %s306, %s307
      %p321 = scmp.eq.s32.totalorder %s37, 3
      %p322 = por %p320, %p321
      %p324 = scmp.ne.s32.totalorder %s307, %s323
      %p325 = scmp.eq.s32.totalorder %s37, 0
      %p326 = por %p324, %p325
      %s327 = ssub.s32 %s39, %s46
      %p328 = scmp.eq.s32.totalorder %s327, 0
      %s330 = sadd.s32 %s329, 1
      %s331 = scalar_select %p328, %s329, %s330
      %p334 = pneg %p328
      %p335 = scmp.eq.s32.totalorder %s31, 3
      %p336 = por %p334, %p335
      %p337 = scmp.ne.s32.totalorder %s329, %s332
      %p338 = scmp.eq.s32.totalorder %s31, 0
      %p339 = por %p337, %p338
      %p340 = scmp.ne.s32.totalorder %s329, %s332
      %p341 = scmp.eq.s32.totalorder %s36, 3
      %p342 = por %p340, %p341
      %p343 = scmp.ne.s32.totalorder %s332, %s333
      %p344 = scmp.eq.s32.totalorder %s36, 0
      %p345 = por %p343, %p344
      %p346 = scmp.ne.s32.totalorder %s332, %s333
      %p347 = scmp.eq.s32.totalorder %s37, 3
      %p348 = por %p346, %p347
      %p350 = scmp.ne.s32.totalorder %s333, %s349
      %p351 = scmp.eq.s32.totalorder %s37, 0
      %p352 = por %p350, %p351
      %s353 = ssub.s32 %s39, %s46
      %p354 = scmp.eq.s32.totalorder %s353, 0
      %s356 = sadd.s32 %s355, 1
      %s357 = scalar_select %p354, %s355, %s356
      %p360 = pneg %p354
      %p361 = scmp.eq.s32.totalorder %s31, 3
      %p362 = por %p360, %p361
      %p363 = scmp.ne.s32.totalorder %s355, %s358
      %p364 = scmp.eq.s32.totalorder %s31, 0
      %p365 = por %p363, %p364
      %p366 = scmp.ne.s32.totalorder %s355, %s358
      %p367 = scmp.eq.s32.totalorder %s36, 3
      %p368 = por %p366, %p367
      %p369 = scmp.ne.s32.totalorder %s358, %s359
      %p370 = scmp.eq.s32.totalorder %s36, 0
      %p371 = por %p369, %p370
      %p372 = scmp.ne.s32.totalorder %s358, %s359
      %p373 = scmp.eq.s32.totalorder %s37, 3
      %p374 = por %p372, %p373
      %p376 = scmp.ne.s32.totalorder %s359, %s375
      %p377 = scmp.eq.s32.totalorder %s37, 0
      %p378 = por %p376, %p377
      %s379 = ssub.s32 %s39, %s46
      %p380 = scmp.eq.s32.totalorder %s379, 0
      %s382 = sadd.s32 %s381, 1
      %s383 = scalar_select %p380, %s381, %s382
      %p386 = pneg %p380
      %p387 = scmp.eq.s32.totalorder %s31, 3
      %p388 = por %p386, %p387
      %p389 = scmp.ne.s32.totalorder %s381, %s384
      %p390 = scmp.eq.s32.totalorder %s31, 0
      %p391 = por %p389, %p390
      %p392 = scmp.ne.s32.totalorder %s381, %s384
      %p393 = scmp.eq.s32.totalorder %s36, 3
      %p394 = por %p392, %p393
      %p395 = scmp.ne.s32.totalorder %s384, %s385
      %p396 = scmp.eq.s32.totalorder %s36, 0
      %p397 = por %p395, %p396
      %p398 = scmp.ne.s32.totalorder %s384, %s385
      %p399 = scmp.eq.s32.totalorder %s37, 3
      %p400 = por %p398, %p399
      %p402 = scmp.ne.s32.totalorder %s385, %s401
      %p403 = scmp.eq.s32.totalorder %s37, 0
      %p404 = por %p402, %p403
      %s405 = ssub.s32 %s39, %s46
      %p406 = scmp.eq.s32.totalorder %s405, 0
      %s408 = sadd.s32 %s407, 1
      %s409 = scalar_select %p406, %s407, %s408
      %p412 = pneg %p406
      %p413 = scmp.eq.s32.totalorder %s31, 3
      %p414 = por %p412, %p413
      %p415 = scmp.ne.s32.totalorder %s407, %s410
      %p416 = scmp.eq.s32.totalorder %s31, 0
      %p417 = por %p415, %p416
      %p418 = scmp.ne.s32.totalorder %s407, %s410
      %p419 = scmp.eq.s32.totalorder %s36, 3
      %p420 = por %p418, %p419
      %p421 = scmp.ne.s32.totalorder %s410, %s411
      %p422 = scmp.eq.s32.totalorder %s36, 0
      %p423 = por %p421, %p422
      %p424 = scmp.ne.s32.totalorder %s410, %s411
      %p425 = scmp.eq.s32.totalorder %s37, 3
      %p426 = por %p424, %p425
      %p428 = scmp.ne.s32.totalorder %s411, %s427
      %p429 = scmp.eq.s32.totalorder %s37, 0
      %p430 = por %p428, %p429
      %s432 = sadd.s32 %s431, 1
      %p435 = scmp.eq.s32.totalorder %s31, 3
      %p436 = scmp.ne.s32.totalorder %s431, %s433
      %p437 = scmp.eq.s32.totalorder %s31, 0
      %p438 = por %p436, %p437
      %p439 = scmp.ne.s32.totalorder %s431, %s433
      %p440 = scmp.eq.s32.totalorder %s36, 3
      %p441 = por %p439, %p440
      %p442 = scmp.ne.s32.totalorder %s433, %s434
      %p443 = scmp.eq.s32.totalorder %s36, 0
      %p444 = por %p442, %p443
      %p445 = scmp.ne.s32.totalorder %s433, %s434
      %p446 = scmp.eq.s32.totalorder %s37, 3
      %p447 = por %p445, %p446
      %p449 = scmp.ne.s32.totalorder %s434, %s448
      %p450 = scmp.eq.s32.totalorder %s37, 0
      %p451 = por %p449, %p450
      %s453 = sadd.s32 %s452, 1
      %p456 = scmp.eq.s32.totalorder %s31, 3
      %p457 = scmp.ne.s32.totalorder %s452, %s454
      %p458 = scmp.eq.s32.totalorder %s31, 0
      %p459 = por %p457, %p458
      %p460 = scmp.ne.s32.totalorder %s452, %s454
      %p461 = scmp.eq.s32.totalorder %s36, 3
      %p462 = por %p460, %p461
      %p463 = scmp.ne.s32.totalorder %s454, %s455
      %p464 = scmp.eq.s32.totalorder %s36, 0
      %p465 = por %p463, %p464
      %p466 = scmp.ne.s32.totalorder %s454, %s455
      %p467 = scmp.eq.s32.totalorder %s37, 3
      %p468 = por %p466, %p467
      %p470 = scmp.ne.s32.totalorder %s455, %s469
      %p471 = scmp.eq.s32.totalorder %s37, 0
      %p472 = por %p470, %p471
      %s473 = ssub.s32 %s38, %s50
      %p474 = scmp.eq.s32.totalorder %s473, 0
      %s476 = sadd.s32 %s475, 1
      %s477 = scalar_select %p474, %s475, %s476
      %p480 = pneg %p474
      %p481 = scmp.eq.s32.totalorder %s31, 3
      %p482 = por %p480, %p481
      %p483 = scmp.ne.s32.totalorder %s475, %s478
      %p484 = scmp.eq.s32.totalorder %s31, 0
      %p485 = por %p483, %p484
      %p486 = scmp.ne.s32.totalorder %s475, %s478
      %p487 = scmp.eq.s32.totalorder %s36, 3
      %p488 = por %p486, %p487
      %p489 = scmp.ne.s32.totalorder %s478, %s479
      %p490 = scmp.eq.s32.totalorder %s36, 0
      %p491 = por %p489, %p490
      %p492 = scmp.ne.s32.totalorder %s478, %s479
      %p493 = scmp.eq.s32.totalorder %s37, 3
      %p494 = por %p492, %p493
      %p496 = scmp.ne.s32.totalorder %s479, %s495
      %p497 = scmp.eq.s32.totalorder %s37, 0
      %p498 = por %p496, %p497
      %s499 = ssub.s32 %s38, %s50
      %p500 = scmp.eq.s32.totalorder %s499, 0
      %s502 = sadd.s32 %s501, 1
      %s503 = scalar_select %p500, %s501, %s502
      %p506 = pneg %p500
      %p507 = scmp.eq.s32.totalorder %s31, 3
      %p508 = por %p506, %p507
      %p509 = scmp.ne.s32.totalorder %s501, %s504
      %p510 = scmp.eq.s32.totalorder %s31, 0
      %p511 = por %p509, %p510
      %p512 = scmp.ne.s32.totalorder %s501, %s504
      %p513 = scmp.eq.s32.totalorder %s36, 3
      %p514 = por %p512, %p513
      %p515 = scmp.ne.s32.totalorder %s504, %s505
      %p516 = scmp.eq.s32.totalorder %s36, 0
      %p517 = por %p515, %p516
      %p518 = scmp.ne.s32.totalorder %s504, %s505
      %p519 = scmp.eq.s32.totalorder %s37, 3
      %p520 = por %p518, %p519
      %p522 = scmp.ne.s32.totalorder %s505, %s521
      %p523 = scmp.eq.s32.totalorder %s37, 0
      %p524 = por %p522, %p523
      %p525 = scmp.le.s32.totalorder 1, %s31
      %p526 = scmp.lt.s32.totalorder %s31, 5
      %p527 = pnand %p525, %p526
      %p528 = pneg %p527
      // Predicated region
      $region9: #{backbone_forward.1} parent=5 // pred_check
        _
      $region10: #{backbone_forward.1} parent=5 // pred_check_branch
        %530 = sbr.rel (%p527) target = $region12
      $region11: #{backbone_forward.1} parent=5 // pred_region
        %s531 = ssub.s32 %s31, 1
        // Predicated region
        $region13: #{backbone_forward.1} parent=11 // pred_check
          %p532 = pneg %p90
        $region14: #{backbone_forward.1} parent=11 // pred_check_branch
          %534 = sbr.rel (%p532) target = $region16
        $region15: #{backbone_forward.1} parent=11 // pred_region
          _
        $region16: #{backbone_forward.1} parent=11 // pred_fallthru
          _
        // Predicated region
        $region17: #{backbone_forward.1} parent=11 // pred_check
          %p535 = pneg %p111
        $region18: #{backbone_forward.1} parent=11 // pred_check_branch
          %537 = sbr.rel (%p535) target = $region20
        $region19: #{backbone_forward.1} parent=11 // pred_region
          _
        $region20: #{backbone_forward.1} parent=11 // pred_fallthru
          _
        // Predicated region
        $region21: #{backbone_forward.1} parent=11 // pred_check
          %p538 = pneg %p444
        $region22: #{backbone_forward.1} parent=11 // pred_check_branch
          %540 = sbr.rel (%p538) target = $region24
        $region23: #{backbone_forward.1} parent=11 // pred_region
          _
        $region24: #{backbone_forward.1} parent=11 // pred_fallthru
          _
        // Predicated region
        $region25: #{backbone_forward.1} parent=11 // pred_check
          %p541 = pneg %p465
        $region26: #{backbone_forward.1} parent=11 // pred_check_branch
          %543 = sbr.rel (%p541) target = $region28
        $region27: #{backbone_forward.1} parent=11 // pred_region
          _
        $region28: #{backbone_forward.1} parent=11 // pred_fallthru
          _
      $region12: #{backbone_forward.1} parent=5 // pred_fallthru
        _
      %p544 = scmp.lt.s32.totalorder %s31, 4
      // Predicated region
      $region29: #{backbone_forward.1} parent=5 // pred_check
        %p545 = pneg %p544
      $region30: #{backbone_forward.1} parent=5 // pred_check_branch
        %547 = sbr.rel (%p545) target = $region32
      $region31: #{backbone_forward.1} parent=5 // pred_region
        // Predicated region
        $region33: #{backbone_forward.1} parent=31 // pred_check
          %p548 = pneg %p63
        $region34: #{backbone_forward.1} parent=31 // pred_check_branch
          %550 = sbr.rel (%p548) target = $region36
        $region35: #{backbone_forward.1} parent=31 // pred_region
          %p551 = scmp.lt.s32.totalorder %s38, 1
          %s552 = scalar_select %p551, %s38, 1
          %s553 = smul.addr %s552, 4
          %s554 = scalar_lea.vmem %s0, %s553
        $region36: #{backbone_forward.1} parent=31 // pred_fallthru
          _
        // Predicated region
        $region37: #{backbone_forward.1} parent=31 // pred_check
          %p555 = pneg %p131
        $region38: #{backbone_forward.1} parent=31 // pred_check_branch
          %557 = sbr.rel (%p555) target = $region40
        $region39: #{backbone_forward.1} parent=31 // pred_region
          %p558 = scmp.lt.s32.totalorder %s39, 1
          %s559 = scalar_select %p558, %s39, 1
          %s560 = smul.addr %s559, 4
          %s561 = smul.addr %s560, 4
          %s562 = scalar_lea.vmem %s3, %s561
        $region40: #{backbone_forward.1} parent=31 // pred_fallthru
          _
        // Predicated region
        $region41: #{backbone_forward.1} parent=31 // pred_check
          %p563 = pneg %p157
        $region42: #{backbone_forward.1} parent=31 // pred_check_branch
          %565 = sbr.rel (%p563) target = $region44
        $region43: #{backbone_forward.1} parent=31 // pred_region
          %p566 = scmp.lt.s32.totalorder %s39, 1
          %s567 = scalar_select %p566, %s39, 1
          %s568 = scalar_lea.vmem %s4, %s567
        $region44: #{backbone_forward.1} parent=31 // pred_fallthru
          _
        // Predicated region
        $region45: #{backbone_forward.1} parent=31 // pred_check
          %p569 = pneg %p183
        $region46: #{backbone_forward.1} parent=31 // pred_check_branch
          %571 = sbr.rel (%p569) target = $region48
        $region47: #{backbone_forward.1} parent=31 // pred_region
          %p572 = scmp.lt.s32.totalorder %s39, 1
          %s573 = scalar_select %p572, %s39, 1
          %s574 = smul.addr %s573, 4
          %s575 = smul.addr %s574, 4
          %s576 = scalar_lea.vmem %s5, %s575
        $region48: #{backbone_forward.1} parent=31 // pred_fallthru
          _
        // Predicated region
        $region49: #{backbone_forward.1} parent=31 // pred_check
          %p577 = pneg %p209
        $region50: #{backbone_forward.1} parent=31 // pred_check_branch
          %579 = sbr.rel (%p577) target = $region52
        $region51: #{backbone_forward.1} parent=31 // pred_region
          %p580 = scmp.lt.s32.totalorder %s39, 1
          %s581 = scalar_select %p580, %s39, 1
          %s582 = scalar_lea.vmem %s6, %s581
        $region52: #{backbone_forward.1} parent=31 // pred_fallthru
          _
        // Predicated region
        $region53: #{backbone_forward.1} parent=31 // pred_check
          %p583 = pneg %p235
        $region54: #{backbone_forward.1} parent=31 // pred_check_branch
          %585 = sbr.rel (%p583) target = $region56
        $region55: #{backbone_forward.1} parent=31 // pred_region
          %p586 = scmp.lt.s32.totalorder %s39, 1
          %s587 = scalar_select %p586, %s39, 1
          %s588 = scalar_lea.vmem %s7, %s587
        $region56: #{backbone_forward.1} parent=31 // pred_fallthru
          _
        // Predicated region
        $region57: #{backbone_forward.1} parent=31 // pred_check
          %p589 = pneg %p261
        $region58: #{backbone_forward.1} parent=31 // pred_check_branch
          %591 = sbr.rel (%p589) target = $region60
        $region59: #{backbone_forward.1} parent=31 // pred_region
          %p592 = scmp.lt.s32.totalorder %s39, 1
          %s593 = scalar_select %p592, %s39, 1
          %s594 = scalar_lea.vmem %s8, %s593
        $region60: #{backbone_forward.1} parent=31 // pred_fallthru
          _
        // Predicated region
        $region61: #{backbone_forward.1} parent=31 // pred_check
          %p595 = pneg %p287
        $region62: #{backbone_forward.1} parent=31 // pred_check_branch
          %597 = sbr.rel (%p595) target = $region64
        $region63: #{backbone_forward.1} parent=31 // pred_region
          %p598 = scmp.lt.s32.totalorder %s39, 1
          %s599 = scalar_select %p598, %s39, 1
          %s600 = smul.addr %s599, 4
          %s601 = smul.addr %s600, 4
          %s602 = scalar_lea.vmem %s9, %s601
        $region64: #{backbone_forward.1} parent=31 // pred_fallthru
          _
        // Predicated region
        $region65: #{backbone_forward.1} parent=31 // pred_check
          %p603 = pneg %p313
        $region66: #{backbone_forward.1} parent=31 // pred_check_branch
          %605 = sbr.rel (%p603) target = $region68
        $region67: #{backbone_forward.1} parent=31 // pred_region
          %p606 = scmp.lt.s32.totalorder %s39, 1
          %s607 = scalar_select %p606, %s39, 1
          %s608 = scalar_lea.vmem %s10, %s607
        $region68: #{backbone_forward.1} parent=31 // pred_fallthru
          _
        // Predicated region
        $region69: #{backbone_forward.1} parent=31 // pred_check
          %p609 = pneg %p339
        $region70: #{backbone_forward.1} parent=31 // pred_check_branch
          %611 = sbr.rel (%p609) target = $region72
        $region71: #{backbone_forward.1} parent=31 // pred_region
          %p612 = scmp.lt.s32.totalorder %s39, 1
          %s613 = scalar_select %p612, %s39, 1
          %s614 = smul.addr %s613, 8
          %s615 = smul.addr %s614, 4
          %s616 = scalar_lea.vmem %s11, %s615
        $region72: #{backbone_forward.1} parent=31 // pred_fallthru
          _
        // Predicated region
        $region73: #{backbone_forward.1} parent=31 // pred_check
          %p617 = pneg %p365
        $region74: #{backbone_forward.1} parent=31 // pred_check_branch
          %619 = sbr.rel (%p617) target = $region76
        $region75: #{backbone_forward.1} parent=31 // pred_region
          %p620 = scmp.lt.s32.totalorder %s39, 1
          %s621 = scalar_select %p620, %s39, 1
          %s622 = scalar_lea.vmem %s12, %s621
        $region76: #{backbone_forward.1} parent=31 // pred_fallthru
          _
        // Predicated region
        $region77: #{backbone_forward.1} parent=31 // pred_check
          %p623 = pneg %p391
        $region78: #{backbone_forward.1} parent=31 // pred_check_branch
          %625 = sbr.rel (%p623) target = $region80
        $region79: #{backbone_forward.1} parent=31 // pred_region
          %p626 = scmp.lt.s32.totalorder %s39, 1
          %s627 = scalar_select %p626, %s39, 1
          %s628 = scalar_lea.vmem %s13, %s627
        $region80: #{backbone_forward.1} parent=31 // pred_fallthru
          _
        // Predicated region
        $region81: #{backbone_forward.1} parent=31 // pred_check
          %p629 = pneg %p417
        $region82: #{backbone_forward.1} parent=31 // pred_check_branch
          %631 = sbr.rel (%p629) target = $region84
        $region83: #{backbone_forward.1} parent=31 // pred_region
          %p632 = scmp.lt.s32.totalorder %s39, 1
          %s633 = scalar_select %p632, %s39, 1
          %s634 = scalar_lea.vmem %s14, %s633
        $region84: #{backbone_forward.1} parent=31 // pred_fallthru
          _
      $region32: #{backbone_forward.1} parent=5 // pred_fallthru
        _
      %p635 = scmp.le.s32.totalorder 1, %s31
      %p636 = scmp.lt.s32.totalorder %s31, 5
      %p637 = pnand %p635, %p636
      %p638 = pneg %p637
      // Predicated region
      $region85: #{backbone_forward.1} parent=5 // pred_check
        _
      $region86: #{backbone_forward.1} parent=5 // pred_check_branch
        %640 = sbr.rel (%p637) target = $region88
      $region87: #{backbone_forward.1} parent=5 // pred_region
        %s641 = ssub.s32 %s31, 1
        %p642 = scmp.lt.s32.totalorder %s40, 1
        %s643 = scalar_select %p642, %s40, 1
        %s644 = smul.addr %s643, 4
        %s645 = scalar_lea.vmem %s0, %s644
        %p646 = pneg %p69
        %p647 = pneg %p66
        %p648 = pneg %p90
        %p649 = pneg %p87
        %p650 = pneg %p111
        %p651 = pneg %p108
        %p652 = scmp.lt.s32.totalorder %s41, 1
        %s653 = scalar_select %p652, %s41, 1
        %s654 = smul.addr %s653, 4
        %s655 = smul.addr %s654, 4
        %s656 = scalar_lea.vmem %s3, %s655
        %p657 = pneg %p137
        %p658 = pneg %p134
        %p659 = scmp.lt.s32.totalorder %s41, 1
        %s660 = scalar_select %p659, %s41, 1
        %s661 = scalar_lea.vmem %s4, %s660
        %p662 = pneg %p163
        %p663 = pneg %p160
        %p664 = scmp.lt.s32.totalorder %s41, 1
        %s665 = scalar_select %p664, %s41, 1
        %s666 = smul.addr %s665, 4
        %s667 = smul.addr %s666, 4
        %s668 = scalar_lea.vmem %s5, %s667
        %p669 = pneg %p189
        %p670 = pneg %p186
        %p671 = scmp.lt.s32.totalorder %s41, 1
        %s672 = scalar_select %p671, %s41, 1
        %s673 = scalar_lea.vmem %s6, %s672
        %p674 = pneg %p215
        %p675 = pneg %p212
        %p676 = scmp.lt.s32.totalorder %s41, 1
        %s677 = scalar_select %p676, %s41, 1
        %s678 = scalar_lea.vmem %s7, %s677
        %p679 = pneg %p241
        %p680 = pneg %p238
        %p681 = scmp.lt.s32.totalorder %s41, 1
        %s682 = scalar_select %p681, %s41, 1
        %s683 = scalar_lea.vmem %s8, %s682
        %p684 = pneg %p267
        %p685 = pneg %p264
        %p686 = scmp.lt.s32.totalorder %s41, 1
        %s687 = scalar_select %p686, %s41, 1
        %s688 = smul.addr %s687, 4
        %s689 = smul.addr %s688, 4
        %s690 = scalar_lea.vmem %s9, %s689
        %p691 = pneg %p293
        %p692 = pneg %p290
        %p693 = scmp.lt.s32.totalorder %s41, 1
        %s694 = scalar_select %p693, %s41, 1
        %s695 = scalar_lea.vmem %s10, %s694
        %p696 = pneg %p319
        %p697 = pneg %p316
        %p698 = scmp.lt.s32.totalorder %s41, 1
        %s699 = scalar_select %p698, %s41, 1
        %s700 = smul.addr %s699, 8
        %s701 = smul.addr %s700, 4
        %s702 = scalar_lea.vmem %s11, %s701
        %p703 = pneg %p345
        %p704 = pneg %p342
        %p705 = scmp.lt.s32.totalorder %s41, 1
        %s706 = scalar_select %p705, %s41, 1
        %s707 = scalar_lea.vmem %s12, %s706
        %p708 = pneg %p371
        %p709 = pneg %p368
        %p710 = scmp.lt.s32.totalorder %s41, 1
        %s711 = scalar_select %p710, %s41, 1
        %s712 = scalar_lea.vmem %s13, %s711
        %p713 = pneg %p397
        %p714 = pneg %p394
        %p715 = scmp.lt.s32.totalorder %s41, 1
        %s716 = scalar_select %p715, %s41, 1
        %s717 = scalar_lea.vmem %s14, %s716
        %p718 = pneg %p423
        %p719 = pneg %p420
        %p720 = pneg %p444
        %p721 = pneg %p441
        %p722 = pneg %p465
        %p723 = pneg %p462
        %p724 = pneg %p491
        %p725 = pneg %p488
        %s726 = sand.u32 %s478, 1
        %s727 = scalar_lea.sflag [#allocation4], %s726
        %s728 = sand.u32 %s478, 1
        %s729 = smul.addr %s728, 8
        %s730 = scalar_lea.vmem [#allocation3], %s729
        %p731 = pneg %p517
        %p732 = pneg %p514
        %s733 = sand.u32 %s504, 1
        %s734 = scalar_lea.sflag [#allocation6], %s733
        %s735 = sand.u32 %s504, 1
        %s736 = scalar_lea.vmem [#allocation5], %s735
        %p737 = scmp.lt.s32.totalorder %s40, 1
        %s738 = scalar_select %p737, %s40, 1
        %s739 = smul.addr %s738, 4
        %s740 = scalar_lea.vmem %s0, %s739
        %p741 = scmp.lt.s32.totalorder %s41, 1
        %s742 = scalar_select %p741, %s41, 1
        %s743 = smul.addr %s742, 4
        %s744 = smul.addr %s743, 4
        %s745 = scalar_lea.vmem %s3, %s744
        %p746 = scmp.lt.s32.totalorder %s41, 1
        %s747 = scalar_select %p746, %s41, 1
        %s748 = scalar_lea.vmem %s4, %s747
        %p749 = scmp.lt.s32.totalorder %s41, 1
        %s750 = scalar_select %p749, %s41, 1
        %s751 = smul.addr %s750, 4
        %s752 = smul.addr %s751, 4
        %s753 = scalar_lea.vmem %s5, %s752
        %p754 = scmp.lt.s32.totalorder %s41, 1
        %s755 = scalar_select %p754, %s41, 1
        %s756 = scalar_lea.vmem %s6, %s755
        %p757 = scmp.lt.s32.totalorder %s41, 1
        %s758 = scalar_select %p757, %s41, 1
        %s759 = scalar_lea.vmem %s7, %s758
        %p760 = scmp.lt.s32.totalorder %s41, 1
        %s761 = scalar_select %p760, %s41, 1
        %s762 = scalar_lea.vmem %s8, %s761
        %p763 = scmp.lt.s32.totalorder %s41, 1
        %s764 = scalar_select %p763, %s41, 1
        %s765 = smul.addr %s764, 4
        %s766 = smul.addr %s765, 4
        %s767 = scalar_lea.vmem %s9, %s766
        %p768 = scmp.lt.s32.totalorder %s41, 1
        %s769 = scalar_select %p768, %s41, 1
        %s770 = scalar_lea.vmem %s10, %s769
        %p771 = scmp.lt.s32.totalorder %s41, 1
        %s772 = scalar_select %p771, %s41, 1
        %s773 = smul.addr %s772, 8
        %s774 = smul.addr %s773, 4
        %s775 = scalar_lea.vmem %s11, %s774
        %p776 = scmp.lt.s32.totalorder %s41, 1
        %s777 = scalar_select %p776, %s41, 1
        %s778 = scalar_lea.vmem %s12, %s777
        %p779 = scmp.lt.s32.totalorder %s41, 1
        %s780 = scalar_select %p779, %s41, 1
        %s781 = scalar_lea.vmem %s13, %s780
        %p782 = scmp.lt.s32.totalorder %s41, 1
        %s783 = scalar_select %p782, %s41, 1
        %s784 = scalar_lea.vmem %s14, %s783
        %p786 = scmp.eq.s32.totalorder %s41, 0
        // Predicated region
        $region89: #{backbone_forward.1} parent=87 // pred_check
          %p787 = pneg %p786
        $region90: #{backbone_forward.1} parent=87 // pred_check_branch
          %789 = sbr.rel (%p787) target = $region92
        $region91: #{backbone_forward.1} parent=87 // pred_region
          %v790 = vld [vmem:[%s740] sm:$0xf]
          %v791 = vunpack.c.l.bf16 %v790
          %v792 = vld [vmem:[%s1] sm:$0x1]
          %v793 = vld [vmem:[%s2] sm:$0x1]
          %vm794 = vcmask 261120
          %v795 = vsel %vm794, %v791, 0.0
          %796 = vadd.xlane.f32.xlu0 %v795
          %v797 = vpop.xlane.xlu0 %796
          %v798 = vrcp.pop 32.0
          %v799 = vmul.f32 %v797, %v798
          %v800 = vsub.f32 %v791, %v799
          %v801 = vmul.f32 %v800, %v800
          %v802 = vsel %vm794, %v801, 0.0
          %803 = vadd.xlane.f32.xlu0 %v802
          %v804 = vpop.xlane.xlu0 %803
          %v805 = vmul.f32 %v804, %v798
          %v806 = vadd.f32 %v805, 1e-05
          %v807 = vrsqrt.pop %v806
          %v808 = vmul.f32 %v800, %v807
          %v810 = vlaneseq
          %v811 = vshrl.u32 %v810, 7
          %v812 = vsub.s32 0, %v811
          %v813 = vrot.slane %v792, %v812
          %v815 = vmul.f32 %v808, %v813
          %v817 = vlaneseq
          %v818 = vshrl.u32 %v817, 7
          %v819 = vsub.s32 0, %v818
          %v820 = vrot.slane %v793, %v819
          %v822 = vadd.f32 %v815, %v820
          %823 = vst.msk [vmem:[#allocation2] sm:$0xff] %vm794, %v822
        $region92: #{backbone_forward.1} parent=87 // pred_fallthru
          _
        %v824 = vld [vmem:[#allocation2] sm:$0xff]
        %v825 = vld [vmem:[%s745] sm:$0xf]
        %v826 = vld [vmem:[%s745 + $0x4] sm:$0xf]
        %v827 = vld [vmem:[%s745 + $0x8] sm:$0xf]
        %v828 = vld [vmem:[%s745 + $0xc] sm:$0xf]
        %v829 = vpack.c.bf16 %v824, %v824
        %v830 = vld [vmem:[%s748] sm:$0x1]
        %v832 = vlaneseq
        %v833 = vshrl.u32 %v832, 7
        %v834 = vsub.s32 0, %v833
        %v835 = vrot.slane %v830, %v834
        %v841 = vunpack.c.l.b16 %v825
        %v842 = vunpack.c.l.b16 %v826
        %v843 = vunpack.c.l.b16 %v827
        %v844 = vunpack.c.l.b16 %v828
        %v845 = vpack.c.b16 %v842, %v841
        %v846 = vpack.c.b16 %v844, %v843
        %vm849 = vcmask 261120
        %v851 = vsel %vm849, %v829, 0
        %853 = vmatprep.subr.bf16.mxu0 0
        %854 = vmatpush1.bf16.msra.mxu0 0
        %855 = vmatprep.subr.bf16.mxu0 0
        %856 = vmatpush1.bf16.msra.mxu0 0
        %857 = vmatprep.subr.bf16.mxu0 0
        %858 = vmatpush1.bf16.msra.mxu0 0
        %859 = vmatprep.subr.bf16.mxu0 0
        %860 = vmatpush1.bf16.msra.mxu0 0
        %861 = vmatprep.subr.bf16.mxu0 0
        %862 = vmatpush1.bf16.msra.mxu0 0
        %863 = vmatprep.subr.bf16.mxu0 0
        %864 = vmatpush1.bf16.msra.mxu0 0
        %865 = vmatprep.subr.bf16.mxu0 0
        %866 = vmatpush1.bf16.msra.mxu0 %v846
        %867 = vmatprep.subr.bf16.mxu0 0
        %868 = vmatpush1.bf16.msra.mxu0 %v845
        %869 = vmatprep.subr.bf16.mxu0 0
        %870 = vmatpush2.bf16.msra.mxu0 0
        %871 = vmatprep.subr.bf16.mxu0 0
        %872 = vmatpush2.bf16.msra.mxu0 0
        %873 = vmatprep.subr.bf16.mxu0 0
        %874 = vmatpush2.bf16.msra.mxu0 0
        %875 = vmatprep.subr.bf16.mxu0 0
        %876 = vmatpush2.bf16.msra.mxu0 0
        %877 = vmatprep.subr.bf16.mxu0 0
        %878 = vmatpush2.bf16.msra.mxu0 0
        %879 = vmatprep.subr.bf16.mxu0 0
        %880 = vmatpush2.bf16.msra.mxu0 0
        %881 = vmatprep.subr.bf16.mxu0 0
        %882 = vmatpush2.bf16.msra.mxu0 0
        %883 = vmatprep.subr.bf16.mxu0 0
        %884 = vmatpush2.bf16.msra.mxu0 0
        %885 = vmatprep.mubr.bf16.mxu0 0
        %886 = vmatmul.mubr.bf16.gmra.mxu0 %v851
        %v887 = vpop.f32.mrf.mxu0
        %v888 = vadd.f32 %v835, %v887
        %v889 = vpop.f32.mrf.mxu0
        %v890 = vpop.f32.mrf.mxu0
        %v891 = vpop.f32.mrf.mxu0
        %892 = vdwg.mxu0
        %894 = vrot.lane.b32.xlu0 %v888, 120
        %v895 = vpop.permute.xlu0 %894
        %897 = vrot.lane.b32.xlu0 %v888, 112
        %v898 = vpop.permute.xlu0 %897
        %900 = vrot.lane.b32.xlu0 %v888, 104
        %v901 = vpop.permute.xlu0 %900
        %v903 = vmul.f32 %v888, 0.35355338
        %v904 = vmul.f32 %v895, 0.35355338
        %v905 = vmul.f32 %v898, 0.35355338
        %v906 = vmul.f32 %v901, 0.35355338
        %907 = vrot.lane.b32.xlu0 %v888, 96
        %v908 = vpop.permute.xlu0 %907
        %vm909 = vcmask 64512
        %v911 = vsel %vm909, %v903, 0
        %v913 = vsel %vm909, %v908, 0
        %915 = vmatprep.subr.mxu0 0.0
        %916 = vmatpush1.xpose.msra.mxu0 0.0
        %917 = vmatprep.subr.mxu0 0.0
        %918 = vmatpush1.xpose.msra.mxu0 0.0
        %919 = vmatprep.subr.mxu0 0.0
        %920 = vmatpush1.xpose.msra.mxu0 0.0
        %921 = vmatprep.subr.mxu0 0.0
        %922 = vmatpush1.xpose.msra.mxu0 0.0
        %923 = vmatprep.subr.mxu0 0.0
        %924 = vmatpush1.xpose.msra.mxu0 0.0
        %925 = vmatprep.subr.mxu0 0.0
        %926 = vmatpush1.xpose.msra.mxu0 0.0
        %927 = vmatprep.subr.mxu0 0.0
        %928 = vmatpush1.xpose.msra.mxu0 0.0
        %929 = vmatprep.subr.mxu0 0.0
        %930 = vmatpush1.xpose.msra.mxu0 0.0
        %931 = vmatprep.subr.mxu0 0.0
        %932 = vmatpush1.xpose.msra.mxu0 0.0
        %933 = vmatprep.subr.mxu0 0.0
        %934 = vmatpush1.xpose.msra.mxu0 0.0
        %935 = vmatprep.subr.mxu0 0.0
        %936 = vmatpush1.xpose.msra.mxu0 0.0
        %937 = vmatprep.subr.mxu0 0.0
        %938 = vmatpush1.xpose.msra.mxu0 0.0
        %939 = vmatprep.subr.mxu0 0.0
        %940 = vmatpush1.xpose.msra.mxu0 0.0
        %941 = vmatprep.subr.mxu0 0.0
        %942 = vmatpush1.xpose.msra.mxu0 0.0
        %943 = vmatprep.subr.mxu0 0.0
        %944 = vmatpush1.xpose.msra.mxu0 0.0
        %945 = vmatprep.subr.mxu0 0.0
        %946 = vmatpush1.xpose.msra.mxu0 %v913
        %947 = vmatprep.subr.mxu0 0.0
        %948 = vmatpush2.xpose.msra.mxu0 0.0
        %949 = vmatprep.subr.mxu0 0.0
        %950 = vmatpush2.xpose.msra.mxu0 0.0
        %951 = vmatprep.subr.mxu0 0.0
        %952 = vmatpush2.xpose.msra.mxu0 0.0
        %953 = vmatprep.subr.mxu0 0.0
        %954 = vmatpush2.xpose.msra.mxu0 0.0
        %955 = vmatprep.subr.mxu0 0.0
        %956 = vmatpush2.xpose.msra.mxu0 0.0
        %957 = vmatprep.subr.mxu0 0.0
        %958 = vmatpush2.xpose.msra.mxu0 0.0
        %959 = vmatprep.subr.mxu0 0.0
        %960 = vmatpush2.xpose.msra.mxu0 0.0
        %961 = vmatprep.subr.mxu0 0.0
        %962 = vmatpush2.xpose.msra.mxu0 0.0
        %963 = vmatprep.subr.mxu0 0.0
        %964 = vmatpush2.xpose.msra.mxu0 0.0
        %965 = vmatprep.subr.mxu0 0.0
        %966 = vmatpush2.xpose.msra.mxu0 0.0
        %967 = vmatprep.subr.mxu0 0.0
        %968 = vmatpush2.xpose.msra.mxu0 0.0
        %969 = vmatprep.subr.mxu0 0.0
        %970 = vmatpush2.xpose.msra.mxu0 0.0
        %971 = vmatprep.subr.mxu0 0.0
        %972 = vmatpush2.xpose.msra.mxu0 0.0
        %973 = vmatprep.subr.mxu0 0.0
        %974 = vmatpush2.xpose.msra.mxu0 0.0
        %975 = vmatprep.subr.mxu0 0.0
        %976 = vmatpush2.xpose.msra.mxu0 0.0
        %977 = vmatprep.subr.mxu0 0.0
        %978 = vmatpush2.xpose.msra.mxu0 0.0
        %979 = vmatprep.mubr.f32.mxu0 0.0
        %980 = vmatmul.mubr.f32.gmra.mxu0 %v911
        %v981 = vpop.f32.mrf.mxu0
        %v982 = vadd.f32 0.0, %v981
        %v983 = vpop.f32.mrf.mxu0
        %984 = vdwg.mxu0
        %985 = vrot.lane.b32.xlu0 %v895, 96
        %v986 = vpop.permute.xlu0 %985
        %v988 = vsel %vm909, %v904, 0
        %v990 = vsel %vm909, %v986, 0
        %992 = vmatprep.subr.mxu0 0.0
        %993 = vmatpush1.xpose.msra.mxu0 0.0
        %994 = vmatprep.subr.mxu0 0.0
        %995 = vmatpush1.xpose.msra.mxu0 0.0
        %996 = vmatprep.subr.mxu0 0.0
        %997 = vmatpush1.xpose.msra.mxu0 0.0
        %998 = vmatprep.subr.mxu0 0.0
        %999 = vmatpush1.xpose.msra.mxu0 0.0
        %1000 = vmatprep.subr.mxu0 0.0
        %1001 = vmatpush1.xpose.msra.mxu0 0.0
        %1002 = vmatprep.subr.mxu0 0.0
        %1003 = vmatpush1.xpose.msra.mxu0 0.0
        %1004 = vmatprep.subr.mxu0 0.0
        %1005 = vmatpush1.xpose.msra.mxu0 0.0
        %1006 = vmatprep.subr.mxu0 0.0
        %1007 = vmatpush1.xpose.msra.mxu0 0.0
        %1008 = vmatprep.subr.mxu0 0.0
        %1009 = vmatpush1.xpose.msra.mxu0 0.0
        %1010 = vmatprep.subr.mxu0 0.0
        %1011 = vmatpush1.xpose.msra.mxu0 0.0
        %1012 = vmatprep.subr.mxu0 0.0
        %1013 = vmatpush1.xpose.msra.mxu0 0.0
        %1014 = vmatprep.subr.mxu0 0.0
        %1015 = vmatpush1.xpose.msra.mxu0 0.0
        %1016 = vmatprep.subr.mxu0 0.0
        %1017 = vmatpush1.xpose.msra.mxu0 0.0
        %1018 = vmatprep.subr.mxu0 0.0
        %1019 = vmatpush1.xpose.msra.mxu0 0.0
        %1020 = vmatprep.subr.mxu0 0.0
        %1021 = vmatpush1.xpose.msra.mxu0 0.0
        %1022 = vmatprep.subr.mxu0 0.0
        %1023 = vmatpush1.xpose.msra.mxu0 %v990
        %1024 = vmatprep.subr.mxu0 0.0
        %1025 = vmatpush2.xpose.msra.mxu0 0.0
        %1026 = vmatprep.subr.mxu0 0.0
        %1027 = vmatpush2.xpose.msra.mxu0 0.0
        %1028 = vmatprep.subr.mxu0 0.0
        %1029 = vmatpush2.xpose.msra.mxu0 0.0
        %1030 = vmatprep.subr.mxu0 0.0
        %1031 = vmatpush2.xpose.msra.mxu0 0.0
        %1032 = vmatprep.subr.mxu0 0.0
        %1033 = vmatpush2.xpose.msra.mxu0 0.0
        %1034 = vmatprep.subr.mxu0 0.0
        %1035 = vmatpush2.xpose.msra.mxu0 0.0
        %1036 = vmatprep.subr.mxu0 0.0
        %1037 = vmatpush2.xpose.msra.mxu0 0.0
        %1038 = vmatprep.subr.mxu0 0.0
        %1039 = vmatpush2.xpose.msra.mxu0 0.0
        %1040 = vmatprep.subr.mxu0 0.0
        %1041 = vmatpush2.xpose.msra.mxu0 0.0
        %1042 = vmatprep.subr.mxu0 0.0
        %1043 = vmatpush2.xpose.msra.mxu0 0.0
        %1044 = vmatprep.subr.mxu0 0.0
        %1045 = vmatpush2.xpose.msra.mxu0 0.0
        %1046 = vmatprep.subr.mxu0 0.0
        %1047 = vmatpush2.xpose.msra.mxu0 0.0
        %1048 = vmatprep.subr.mxu0 0.0
        %1049 = vmatpush2.xpose.msra.mxu0 0.0
        %1050 = vmatprep.subr.mxu0 0.0
        %1051 = vmatpush2.xpose.msra.mxu0 0.0
        %1052 = vmatprep.subr.mxu0 0.0
        %1053 = vmatpush2.xpose.msra.mxu0 0.0
        %1054 = vmatprep.subr.mxu0 0.0
        %1055 = vmatpush2.xpose.msra.mxu0 0.0
        %1056 = vmatprep.mubr.f32.mxu0 0.0
        %1057 = vmatmul.mubr.f32.gmra.mxu0 %v988
        %v1058 = vpop.f32.mrf.mxu0
        %v1059 = vadd.f32 0.0, %v1058
        %v1060 = vpop.f32.mrf.mxu0
        %1061 = vdwg.mxu0
        %1062 = vrot.lane.b32.xlu0 %v898, 96
        %v1063 = vpop.permute.xlu0 %1062
        %v1065 = vsel %vm909, %v905, 0
        %v1067 = vsel %vm909, %v1063, 0
        %1069 = vmatprep.subr.mxu0 0.0
        %1070 = vmatpush1.xpose.msra.mxu0 0.0
        %1071 = vmatprep.subr.mxu0 0.0
        %1072 = vmatpush1.xpose.msra.mxu0 0.0
        %1073 = vmatprep.subr.mxu0 0.0
        %1074 = vmatpush1.xpose.msra.mxu0 0.0
        %1075 = vmatprep.subr.mxu0 0.0
        %1076 = vmatpush1.xpose.msra.mxu0 0.0
        %1077 = vmatprep.subr.mxu0 0.0
        %1078 = vmatpush1.xpose.msra.mxu0 0.0
        %1079 = vmatprep.subr.mxu0 0.0
        %1080 = vmatpush1.xpose.msra.mxu0 0.0
        %1081 = vmatprep.subr.mxu0 0.0
        %1082 = vmatpush1.xpose.msra.mxu0 0.0
        %1083 = vmatprep.subr.mxu0 0.0
        %1084 = vmatpush1.xpose.msra.mxu0 0.0
        %1085 = vmatprep.subr.mxu0 0.0
        %1086 = vmatpush1.xpose.msra.mxu0 0.0
        %1087 = vmatprep.subr.mxu0 0.0
        %1088 = vmatpush1.xpose.msra.mxu0 0.0
        %1089 = vmatprep.subr.mxu0 0.0
        %1090 = vmatpush1.xpose.msra.mxu0 0.0
        %1091 = vmatprep.subr.mxu0 0.0
        %1092 = vmatpush1.xpose.msra.mxu0 0.0
        %1093 = vmatprep.subr.mxu0 0.0
        %1094 = vmatpush1.xpose.msra.mxu0 0.0
        %1095 = vmatprep.subr.mxu0 0.0
        %1096 = vmatpush1.xpose.msra.mxu0 0.0
        %1097 = vmatprep.subr.mxu0 0.0
        %1098 = vmatpush1.xpose.msra.mxu0 0.0
        %1099 = vmatprep.subr.mxu0 0.0
        %1100 = vmatpush1.xpose.msra.mxu0 %v1067
        %1101 = vmatprep.subr.mxu0 0.0
        %1102 = vmatpush2.xpose.msra.mxu0 0.0
        %1103 = vmatprep.subr.mxu0 0.0
        %1104 = vmatpush2.xpose.msra.mxu0 0.0
        %1105 = vmatprep.subr.mxu0 0.0
        %1106 = vmatpush2.xpose.msra.mxu0 0.0
        %1107 = vmatprep.subr.mxu0 0.0
        %1108 = vmatpush2.xpose.msra.mxu0 0.0
        %1109 = vmatprep.subr.mxu0 0.0
        %1110 = vmatpush2.xpose.msra.mxu0 0.0
        %1111 = vmatprep.subr.mxu0 0.0
        %1112 = vmatpush2.xpose.msra.mxu0 0.0
        %1113 = vmatprep.subr.mxu0 0.0
        %1114 = vmatpush2.xpose.msra.mxu0 0.0
        %1115 = vmatprep.subr.mxu0 0.0
        %1116 = vmatpush2.xpose.msra.mxu0 0.0
        %1117 = vmatprep.subr.mxu0 0.0
        %1118 = vmatpush2.xpose.msra.mxu0 0.0
        %1119 = vmatprep.subr.mxu0 0.0
        %1120 = vmatpush2.xpose.msra.mxu0 0.0
        %1121 = vmatprep.subr.mxu0 0.0
        %1122 = vmatpush2.xpose.msra.mxu0 0.0
        %1123 = vmatprep.subr.mxu0 0.0
        %1124 = vmatpush2.xpose.msra.mxu0 0.0
        %1125 = vmatprep.subr.mxu0 0.0
        %1126 = vmatpush2.xpose.msra.mxu0 0.0
        %1127 = vmatprep.subr.mxu0 0.0
        %1128 = vmatpush2.xpose.msra.mxu0 0.0
        %1129 = vmatprep.subr.mxu0 0.0
        %1130 = vmatpush2.xpose.msra.mxu0 0.0
        %1131 = vmatprep.subr.mxu0 0.0
        %1132 = vmatpush2.xpose.msra.mxu0 0.0
        %1133 = vmatprep.mubr.f32.mxu0 0.0
        %1134 = vmatmul.mubr.f32.gmra.mxu0 %v1065
        %v1135 = vpop.f32.mrf.mxu0
        %v1136 = vadd.f32 0.0, %v1135
        %v1137 = vpop.f32.mrf.mxu0
        %1138 = vdwg.mxu0
        %1139 = vrot.lane.b32.xlu0 %v901, 96
        %v1140 = vpop.permute.xlu0 %1139
        %v1142 = vsel %vm909, %v906, 0
        %v1144 = vsel %vm909, %v1140, 0
        %1146 = vmatprep.subr.mxu0 0.0
        %1147 = vmatpush1.xpose.msra.mxu0 0.0
        %1148 = vmatprep.subr.mxu0 0.0
        %1149 = vmatpush1.xpose.msra.mxu0 0.0
        %1150 = vmatprep.subr.mxu0 0.0
        %1151 = vmatpush1.xpose.msra.mxu0 0.0
        %1152 = vmatprep.subr.mxu0 0.0
        %1153 = vmatpush1.xpose.msra.mxu0 0.0
        %1154 = vmatprep.subr.mxu0 0.0
        %1155 = vmatpush1.xpose.msra.mxu0 0.0
        %1156 = vmatprep.subr.mxu0 0.0
        %1157 = vmatpush1.xpose.msra.mxu0 0.0
        %1158 = vmatprep.subr.mxu0 0.0
        %1159 = vmatpush1.xpose.msra.mxu0 0.0
        %1160 = vmatprep.subr.mxu0 0.0
        %1161 = vmatpush1.xpose.msra.mxu0 0.0
        %1162 = vmatprep.subr.mxu0 0.0
        %1163 = vmatpush1.xpose.msra.mxu0 0.0
        %1164 = vmatprep.subr.mxu0 0.0
        %1165 = vmatpush1.xpose.msra.mxu0 0.0
        %1166 = vmatprep.subr.mxu0 0.0
        %1167 = vmatpush1.xpose.msra.mxu0 0.0
        %1168 = vmatprep.subr.mxu0 0.0
        %1169 = vmatpush1.xpose.msra.mxu0 0.0
        %1170 = vmatprep.subr.mxu0 0.0
        %1171 = vmatpush1.xpose.msra.mxu0 0.0
        %1172 = vmatprep.subr.mxu0 0.0
        %1173 = vmatpush1.xpose.msra.mxu0 0.0
        %1174 = vmatprep.subr.mxu0 0.0
        %1175 = vmatpush1.xpose.msra.mxu0 0.0
        %1176 = vmatprep.subr.mxu0 0.0
        %1177 = vmatpush1.xpose.msra.mxu0 %v1144
        %1178 = vmatprep.subr.mxu0 0.0
        %1179 = vmatpush2.xpose.msra.mxu0 0.0
        %1180 = vmatprep.subr.mxu0 0.0
        %1181 = vmatpush2.xpose.msra.mxu0 0.0
        %1182 = vmatprep.subr.mxu0 0.0
        %1183 = vmatpush2.xpose.msra.mxu0 0.0
        %1184 = vmatprep.subr.mxu0 0.0
        %1185 = vmatpush2.xpose.msra.mxu0 0.0
        %1186 = vmatprep.subr.mxu0 0.0
        %1187 = vmatpush2.xpose.msra.mxu0 0.0
        %1188 = vmatprep.subr.mxu0 0.0
        %1189 = vmatpush2.xpose.msra.mxu0 0.0
        %1190 = vmatprep.subr.mxu0 0.0
        %1191 = vmatpush2.xpose.msra.mxu0 0.0
        %1192 = vmatprep.subr.mxu0 0.0
        %1193 = vmatpush2.xpose.msra.mxu0 0.0
        %1194 = vmatprep.subr.mxu0 0.0
        %1195 = vmatpush2.xpose.msra.mxu0 0.0
        %1196 = vmatprep.subr.mxu0 0.0
        %1197 = vmatpush2.xpose.msra.mxu0 0.0
        %1198 = vmatprep.subr.mxu0 0.0
        %1199 = vmatpush2.xpose.msra.mxu0 0.0
        %1200 = vmatprep.subr.mxu0 0.0
        %1201 = vmatpush2.xpose.msra.mxu0 0.0
        %1202 = vmatprep.subr.mxu0 0.0
        %1203 = vmatpush2.xpose.msra.mxu0 0.0
        %1204 = vmatprep.subr.mxu0 0.0
        %1205 = vmatpush2.xpose.msra.mxu0 0.0
        %1206 = vmatprep.subr.mxu0 0.0
        %1207 = vmatpush2.xpose.msra.mxu0 0.0
        %1208 = vmatprep.subr.mxu0 0.0
        %1209 = vmatpush2.xpose.msra.mxu0 0.0
        %1210 = vmatprep.mubr.f32.mxu0 0.0
        %1211 = vmatmul.mubr.f32.gmra.mxu0 %v1142
        %v1212 = vpop.f32.mrf.mxu0
        %v1213 = vadd.f32 0.0, %v1212
        %v1214 = vpop.f32.mrf.mxu0
        %1215 = vdwg.mxu0
        %v1216 = vsel %vm909, %v982, -inf
        %1217 = vmax.xlane.f32.xlu0 %v1216
        %v1218 = vpop.xlane.xlu0 %1217
        %v1219 = vsel %vm909, %v1059, -inf
        %1220 = vmax.xlane.f32.xlu0 %v1219
        %v1221 = vpop.xlane.xlu0 %1220
        %v1222 = vsel %vm909, %v1136, -inf
        %1223 = vmax.xlane.f32.xlu0 %v1222
        %v1224 = vpop.xlane.xlu0 %1223
        %v1225 = vsel %vm909, %v1213, -inf
        %1226 = vmax.xlane.f32.xlu0 %v1225
        %v1227 = vpop.xlane.xlu0 %1226
        %v1228 = vsub.f32 %v982, %v1218
        %v1229 = vsub.f32 %v1059, %v1221
        %v1230 = vsub.f32 %v1136, %v1224
        %v1231 = vsub.f32 %v1213, %v1227
        %v1232 = vmul.f32 %v1228, 1.442695
        %v1233 = vpow.pop %v1232
        %v1234 = vmul.f32 %v1229, 1.442695
        %v1235 = vpow.pop %v1234
        %v1236 = vmul.f32 %v1230, 1.442695
        %v1237 = vpow.pop %v1236
        %v1238 = vmul.f32 %v1231, 1.442695
        %v1239 = vpow.pop %v1238
        %v1240 = vsel %vm909, %v1233, 0.0
        %1241 = vadd.xlane.f32.xlu0 %v1240
        %v1242 = vpop.xlane.xlu0 %1241
        %v1243 = vsel %vm909, %v1235, 0.0
        %1244 = vadd.xlane.f32.xlu0 %v1243
        %v1245 = vpop.xlane.xlu0 %1244
        %v1246 = vsel %vm909, %v1237, 0.0
        %1247 = vadd.xlane.f32.xlu0 %v1246
        %v1248 = vpop.xlane.xlu0 %1247
        %v1249 = vsel %vm909, %v1239, 0.0
        %1250 = vadd.xlane.f32.xlu0 %v1249
        %v1251 = vpop.xlane.xlu0 %1250
        %v1252 = vrcp.pop %v1242
        %v1253 = vrcp.pop %v1245
        %v1254 = vrcp.pop %v1248
        %v1255 = vrcp.pop %v1251
        %v1256 = vmul.f32 %v1233, %v1252
        %v1257 = vmul.f32 %v1235, %v1253
        %v1258 = vmul.f32 %v1237, %v1254
        %v1259 = vmul.f32 %v1239, %v1255
        %1260 = vrot.lane.b32.xlu0 %v888, 64
        %v1261 = vpop.permute.xlu0 %1260
        %v1264 = vsel %vm909, %v1256, 0
        %1266 = vmatprep.subr.mxu0 0.0
        %1267 = vmatpush1.msra.mxu0 0.0
        %1268 = vmatprep.subr.mxu0 0.0
        %1269 = vmatpush1.msra.mxu0 0.0
        %1270 = vmatprep.subr.mxu0 0.0
        %1271 = vmatpush1.msra.mxu0 0.0
        %1272 = vmatprep.subr.mxu0 0.0
        %1273 = vmatpush1.msra.mxu0 0.0
        %1274 = vmatprep.subr.mxu0 0.0
        %1275 = vmatpush1.msra.mxu0 0.0
        %1276 = vmatprep.subr.mxu0 0.0
        %1277 = vmatpush1.msra.mxu0 0.0
        %1278 = vmatprep.subr.mxu0 0.0
        %1279 = vmatpush1.msra.mxu0 0.0
        %1280 = vmatprep.subr.mxu0 0.0
        %1281 = vmatpush1.msra.mxu0 0.0
        %1282 = vmatprep.subr.mxu0 0.0
        %1283 = vmatpush1.msra.mxu0 0.0
        %1284 = vmatprep.subr.mxu0 0.0
        %1285 = vmatpush1.msra.mxu0 0.0
        %1286 = vmatprep.subr.mxu0 0.0
        %1287 = vmatpush1.msra.mxu0 0.0
        %1288 = vmatprep.subr.mxu0 0.0
        %1289 = vmatpush1.msra.mxu0 0.0
        %1290 = vmatprep.subr.mxu0 0.0
        %1291 = vmatpush1.msra.mxu0 0.0
        %1292 = vmatprep.subr.mxu0 0.0
        %1293 = vmatpush1.msra.mxu0 0.0
        %1294 = vmatprep.subr.mxu0 0.0
        %1295 = vmatpush1.msra.mxu0 0.0
        %1296 = vmatprep.subr.mxu0 0.0
        %1297 = vmatpush1.msra.mxu0 %v1261
        %1298 = vmatprep.subr.mxu0 0.0
        %1299 = vmatpush2.msra.mxu0 0.0
        %1300 = vmatprep.subr.mxu0 0.0
        %1301 = vmatpush2.msra.mxu0 0.0
        %1302 = vmatprep.subr.mxu0 0.0
        %1303 = vmatpush2.msra.mxu0 0.0
        %1304 = vmatprep.subr.mxu0 0.0
        %1305 = vmatpush2.msra.mxu0 0.0
        %1306 = vmatprep.subr.mxu0 0.0
        %1307 = vmatpush2.msra.mxu0 0.0
        %1308 = vmatprep.subr.mxu0 0.0
        %1309 = vmatpush2.msra.mxu0 0.0
        %1310 = vmatprep.subr.mxu0 0.0
        %1311 = vmatpush2.msra.mxu0 0.0
        %1312 = vmatprep.subr.mxu0 0.0
        %1313 = vmatpush2.msra.mxu0 0.0
        %1314 = vmatprep.subr.mxu0 0.0
        %1315 = vmatpush2.msra.mxu0 0.0
        %1316 = vmatprep.subr.mxu0 0.0
        %1317 = vmatpush2.msra.mxu0 0.0
        %1318 = vmatprep.subr.mxu0 0.0
        %1319 = vmatpush2.msra.mxu0 0.0
        %1320 = vmatprep.subr.mxu0 0.0
        %1321 = vmatpush2.msra.mxu0 0.0
        %1322 = vmatprep.subr.mxu0 0.0
        %1323 = vmatpush2.msra.mxu0 0.0
        %1324 = vmatprep.subr.mxu0 0.0
        %1325 = vmatpush2.msra.mxu0 0.0
        %1326 = vmatprep.subr.mxu0 0.0
        %1327 = vmatpush2.msra.mxu0 0.0
        %1328 = vmatprep.subr.mxu0 0.0
        %1329 = vmatpush2.msra.mxu0 0.0
        %1330 = vmatprep.mubr.f32.mxu0 0.0
        %1331 = vmatmul.mubr.f32.gmra.mxu0 %v1264
        %v1332 = vpop.f32.mrf.mxu0
        %v1333 = vadd.f32 0.0, %v1332
        %v1334 = vpop.f32.mrf.mxu0
        %1335 = vdwg.mxu0
        %1336 = vrot.lane.b32.xlu0 %v895, 64
        %v1337 = vpop.permute.xlu0 %1336
        %v1340 = vsel %vm909, %v1257, 0
        %1342 = vmatprep.subr.mxu0 0.0
        %1343 = vmatpush1.msra.mxu0 0.0
        %1344 = vmatprep.subr.mxu0 0.0
        %1345 = vmatpush1.msra.mxu0 0.0
        %1346 = vmatprep.subr.mxu0 0.0
        %1347 = vmatpush1.msra.mxu0 0.0
        %1348 = vmatprep.subr.mxu0 0.0
        %1349 = vmatpush1.msra.mxu0 0.0
        %1350 = vmatprep.subr.mxu0 0.0
        %1351 = vmatpush1.msra.mxu0 0.0
        %1352 = vmatprep.subr.mxu0 0.0
        %1353 = vmatpush1.msra.mxu0 0.0
        %1354 = vmatprep.subr.mxu0 0.0
        %1355 = vmatpush1.msra.mxu0 0.0
        %1356 = vmatprep.subr.mxu0 0.0
        %1357 = vmatpush1.msra.mxu0 0.0
        %1358 = vmatprep.subr.mxu0 0.0
        %1359 = vmatpush1.msra.mxu0 0.0
        %1360 = vmatprep.subr.mxu0 0.0
        %1361 = vmatpush1.msra.mxu0 0.0
        %1362 = vmatprep.subr.mxu0 0.0
        %1363 = vmatpush1.msra.mxu0 0.0
        %1364 = vmatprep.subr.mxu0 0.0
        %1365 = vmatpush1.msra.mxu0 0.0
        %1366 = vmatprep.subr.mxu0 0.0
        %1367 = vmatpush1.msra.mxu0 0.0
        %1368 = vmatprep.subr.mxu0 0.0
        %1369 = vmatpush1.msra.mxu0 0.0
        %1370 = vmatprep.subr.mxu0 0.0
        %1371 = vmatpush1.msra.mxu0 0.0
        %1372 = vmatprep.subr.mxu0 0.0
        %1373 = vmatpush1.msra.mxu0 %v1337
        %1374 = vmatprep.subr.mxu0 0.0
        %1375 = vmatpush2.msra.mxu0 0.0
        %1376 = vmatprep.subr.mxu0 0.0
        %1377 = vmatpush2.msra.mxu0 0.0
        %1378 = vmatprep.subr.mxu0 0.0
        %1379 = vmatpush2.msra.mxu0 0.0
        %1380 = vmatprep.subr.mxu0 0.0
        %1381 = vmatpush2.msra.mxu0 0.0
        %1382 = vmatprep.subr.mxu0 0.0
        %1383 = vmatpush2.msra.mxu0 0.0
        %1384 = vmatprep.subr.mxu0 0.0
        %1385 = vmatpush2.msra.mxu0 0.0
        %1386 = vmatprep.subr.mxu0 0.0
        %1387 = vmatpush2.msra.mxu0 0.0
        %1388 = vmatprep.subr.mxu0 0.0
        %1389 = vmatpush2.msra.mxu0 0.0
        %1390 = vmatprep.subr.mxu0 0.0
        %1391 = vmatpush2.msra.mxu0 0.0
        %1392 = vmatprep.subr.mxu0 0.0
        %1393 = vmatpush2.msra.mxu0 0.0
        %1394 = vmatprep.subr.mxu0 0.0
        %1395 = vmatpush2.msra.mxu0 0.0
        %1396 = vmatprep.subr.mxu0 0.0
        %1397 = vmatpush2.msra.mxu0 0.0
        %1398 = vmatprep.subr.mxu0 0.0
        %1399 = vmatpush2.msra.mxu0 0.0
        %1400 = vmatprep.subr.mxu0 0.0
        %1401 = vmatpush2.msra.mxu0 0.0
        %1402 = vmatprep.subr.mxu0 0.0
        %1403 = vmatpush2.msra.mxu0 0.0
        %1404 = vmatprep.subr.mxu0 0.0
        %1405 = vmatpush2.msra.mxu0 0.0
        %1406 = vmatprep.mubr.f32.mxu0 0.0
        %1407 = vmatmul.mubr.f32.gmra.mxu0 %v1340
        %v1408 = vpop.f32.mrf.mxu0
        %v1409 = vadd.f32 0.0, %v1408
        %v1410 = vpop.f32.mrf.mxu0
        %1411 = vdwg.mxu0
        %1412 = vrot.lane.b32.xlu0 %v898, 64
        %v1413 = vpop.permute.xlu0 %1412
        %v1416 = vsel %vm909, %v1258, 0
        %1418 = vmatprep.subr.mxu0 0.0
        %1419 = vmatpush1.msra.mxu0 0.0
        %1420 = vmatprep.subr.mxu0 0.0
        %1421 = vmatpush1.msra.mxu0 0.0
        %1422 = vmatprep.subr.mxu0 0.0
        %1423 = vmatpush1.msra.mxu0 0.0
        %1424 = vmatprep.subr.mxu0 0.0
        %1425 = vmatpush1.msra.mxu0 0.0
        %1426 = vmatprep.subr.mxu0 0.0
        %1427 = vmatpush1.msra.mxu0 0.0
        %1428 = vmatprep.subr.mxu0 0.0
        %1429 = vmatpush1.msra.mxu0 0.0
        %1430 = vmatprep.subr.mxu0 0.0
        %1431 = vmatpush1.msra.mxu0 0.0
        %1432 = vmatprep.subr.mxu0 0.0
        %1433 = vmatpush1.msra.mxu0 0.0
        %1434 = vmatprep.subr.mxu0 0.0
        %1435 = vmatpush1.msra.mxu0 0.0
        %1436 = vmatprep.subr.mxu0 0.0
        %1437 = vmatpush1.msra.mxu0 0.0
        %1438 = vmatprep.subr.mxu0 0.0
        %1439 = vmatpush1.msra.mxu0 0.0
        %1440 = vmatprep.subr.mxu0 0.0
        %1441 = vmatpush1.msra.mxu0 0.0
        %1442 = vmatprep.subr.mxu0 0.0
        %1443 = vmatpush1.msra.mxu0 0.0
        %1444 = vmatprep.subr.mxu0 0.0
        %1445 = vmatpush1.msra.mxu0 0.0
        %1446 = vmatprep.subr.mxu0 0.0
        %1447 = vmatpush1.msra.mxu0 0.0
        %1448 = vmatprep.subr.mxu0 0.0
        %1449 = vmatpush1.msra.mxu0 %v1413
        %1450 = vmatprep.subr.mxu0 0.0
        %1451 = vmatpush2.msra.mxu0 0.0
        %1452 = vmatprep.subr.mxu0 0.0
        %1453 = vmatpush2.msra.mxu0 0.0
        %1454 = vmatprep.subr.mxu0 0.0
        %1455 = vmatpush2.msra.mxu0 0.0
        %1456 = vmatprep.subr.mxu0 0.0
        %1457 = vmatpush2.msra.mxu0 0.0
        %1458 = vmatprep.subr.mxu0 0.0
        %1459 = vmatpush2.msra.mxu0 0.0
        %1460 = vmatprep.subr.mxu0 0.0
        %1461 = vmatpush2.msra.mxu0 0.0
        %1462 = vmatprep.subr.mxu0 0.0
        %1463 = vmatpush2.msra.mxu0 0.0
        %1464 = vmatprep.subr.mxu0 0.0
        %1465 = vmatpush2.msra.mxu0 0.0
        %1466 = vmatprep.subr.mxu0 0.0
        %1467 = vmatpush2.msra.mxu0 0.0
        %1468 = vmatprep.subr.mxu0 0.0
        %1469 = vmatpush2.msra.mxu0 0.0
        %1470 = vmatprep.subr.mxu0 0.0
        %1471 = vmatpush2.msra.mxu0 0.0
        %1472 = vmatprep.subr.mxu0 0.0
        %1473 = vmatpush2.msra.mxu0 0.0
        %1474 = vmatprep.subr.mxu0 0.0
        %1475 = vmatpush2.msra.mxu0 0.0
        %1476 = vmatprep.subr.mxu0 0.0
        %1477 = vmatpush2.msra.mxu0 0.0
        %1478 = vmatprep.subr.mxu0 0.0
        %1479 = vmatpush2.msra.mxu0 0.0
        %1480 = vmatprep.subr.mxu0 0.0
        %1481 = vmatpush2.msra.mxu0 0.0
        %1482 = vmatprep.mubr.f32.mxu0 0.0
        %1483 = vmatmul.mubr.f32.gmra.mxu0 %v1416
        %v1484 = vpop.f32.mrf.mxu0
        %v1485 = vadd.f32 0.0, %v1484
        %v1486 = vpop.f32.mrf.mxu0
        %1487 = vdwg.mxu0
        %1488 = vrot.lane.b32.xlu0 %v901, 64
        %v1489 = vpop.permute.xlu0 %1488
        %v1492 = vsel %vm909, %v1259, 0
        %1494 = vmatprep.subr.mxu0 0.0
        %1495 = vmatpush1.msra.mxu0 0.0
        %1496 = vmatprep.subr.mxu0 0.0
        %1497 = vmatpush1.msra.mxu0 0.0
        %1498 = vmatprep.subr.mxu0 0.0
        %1499 = vmatpush1.msra.mxu0 0.0
        %1500 = vmatprep.subr.mxu0 0.0
        %1501 = vmatpush1.msra.mxu0 0.0
        %1502 = vmatprep.subr.mxu0 0.0
        %1503 = vmatpush1.msra.mxu0 0.0
        %1504 = vmatprep.subr.mxu0 0.0
        %1505 = vmatpush1.msra.mxu0 0.0
        %1506 = vmatprep.subr.mxu0 0.0
        %1507 = vmatpush1.msra.mxu0 0.0
        %1508 = vmatprep.subr.mxu0 0.0
        %1509 = vmatpush1.msra.mxu0 0.0
        %1510 = vmatprep.subr.mxu0 0.0
        %1511 = vmatpush1.msra.mxu0 0.0
        %1512 = vmatprep.subr.mxu0 0.0
        %1513 = vmatpush1.msra.mxu0 0.0
        %1514 = vmatprep.subr.mxu0 0.0
        %1515 = vmatpush1.msra.mxu0 0.0
        %1516 = vmatprep.subr.mxu0 0.0
        %1517 = vmatpush1.msra.mxu0 0.0
        %1518 = vmatprep.subr.mxu0 0.0
        %1519 = vmatpush1.msra.mxu0 0.0
        %1520 = vmatprep.subr.mxu0 0.0
        %1521 = vmatpush1.msra.mxu0 0.0
        %1522 = vmatprep.subr.mxu0 0.0
        %1523 = vmatpush1.msra.mxu0 0.0
        %1524 = vmatprep.subr.mxu0 0.0
        %1525 = vmatpush1.msra.mxu0 %v1489
        %1526 = vmatprep.subr.mxu0 0.0
        %1527 = vmatpush2.msra.mxu0 0.0
        %1528 = vmatprep.subr.mxu0 0.0
        %1529 = vmatpush2.msra.mxu0 0.0
        %1530 = vmatprep.subr.mxu0 0.0
        %1531 = vmatpush2.msra.mxu0 0.0
        %1532 = vmatprep.subr.mxu0 0.0
        %1533 = vmatpush2.msra.mxu0 0.0
        %1534 = vmatprep.subr.mxu0 0.0
        %1535 = vmatpush2.msra.mxu0 0.0
        %1536 = vmatprep.subr.mxu0 0.0
        %1537 = vmatpush2.msra.mxu0 0.0
        %1538 = vmatprep.subr.mxu0 0.0
        %1539 = vmatpush2.msra.mxu0 0.0
        %1540 = vmatprep.subr.mxu0 0.0
        %1541 = vmatpush2.msra.mxu0 0.0
        %1542 = vmatprep.subr.mxu0 0.0
        %1543 = vmatpush2.msra.mxu0 0.0
        %1544 = vmatprep.subr.mxu0 0.0
        %1545 = vmatpush2.msra.mxu0 0.0
        %1546 = vmatprep.subr.mxu0 0.0
        %1547 = vmatpush2.msra.mxu0 0.0
        %1548 = vmatprep.subr.mxu0 0.0
        %1549 = vmatpush2.msra.mxu0 0.0
        %1550 = vmatprep.subr.mxu0 0.0
        %1551 = vmatpush2.msra.mxu0 0.0
        %1552 = vmatprep.subr.mxu0 0.0
        %1553 = vmatpush2.msra.mxu0 0.0
        %1554 = vmatprep.subr.mxu0 0.0
        %1555 = vmatpush2.msra.mxu0 0.0
        %1556 = vmatprep.subr.mxu0 0.0
        %1557 = vmatpush2.msra.mxu0 0.0
        %1558 = vmatprep.mubr.f32.mxu0 0.0
        %1559 = vmatmul.mubr.f32.gmra.mxu0 %v1492
        %v1560 = vpop.f32.mrf.mxu0
        %v1561 = vadd.f32 0.0, %v1560
        %v1562 = vpop.f32.mrf.mxu0
        %1563 = vdwg.mxu0
        %1565 = vrot.lane.b32.xlu0 %v1409, 8
        %v1566 = vpop.permute.xlu0 %1565
        %1569 = vrot.lane.b32.xlu0 %v1485, 16
        %v1570 = vpop.permute.xlu0 %1569
        %1573 = vrot.lane.b32.xlu0 %v1561, 24
        %v1574 = vpop.permute.xlu0 %1573
        %v1576 = vsel %vm909, %v1333, %v1566
        %vm1577 = vcmask 130048
        %v1578 = vsel %vm1577, %v1576, %v1570
        %vm1579 = vcmask 195584
        %v1580 = vsel %vm1579, %v1578, %v1574
        %v1581 = vld [vmem:[%s753] sm:$0xf]
        %v1582 = vld [vmem:[%s753 + $0x4] sm:$0xf]
        %v1583 = vld [vmem:[%s753 + $0x8] sm:$0xf]
        %v1584 = vld [vmem:[%s753 + $0xc] sm:$0xf]
        %v1585 = vpack.c.bf16 %v1580, %v1580
        %v1586 = vld [vmem:[%s756] sm:$0x1]
        %v1588 = vlaneseq
        %v1589 = vshrl.u32 %v1588, 7
        %v1590 = vsub.s32 0, %v1589
        %v1591 = vrot.slane %v1586, %v1590
        %v1597 = vunpack.c.l.b16 %v1581
        %v1598 = vunpack.c.l.b16 %v1582
        %v1599 = vunpack.c.l.b16 %v1583
        %v1600 = vunpack.c.l.b16 %v1584
        %v1601 = vpack.c.b16 %v1598, %v1597
        %v1602 = vpack.c.b16 %v1600, %v1599
        %v1606 = vsel %vm849, %v1585, 0
        %1608 = vmatprep.subr.bf16.mxu0 0
        %1609 = vmatpush1.bf16.msra.mxu0 0
        %1610 = vmatprep.subr.bf16.mxu0 0
        %1611 = vmatpush1.bf16.msra.mxu0 0
        %1612 = vmatprep.subr.bf16.mxu0 0
        %1613 = vmatpush1.bf16.msra.mxu0 0
        %1614 = vmatprep.subr.bf16.mxu0 0
        %1615 = vmatpush1.bf16.msra.mxu0 0
        %1616 = vmatprep.subr.bf16.mxu0 0
        %1617 = vmatpush1.bf16.msra.mxu0 0
        %1618 = vmatprep.subr.bf16.mxu0 0
        %1619 = vmatpush1.bf16.msra.mxu0 0
        %1620 = vmatprep.subr.bf16.mxu0 0
        %1621 = vmatpush1.bf16.msra.mxu0 %v1602
        %1622 = vmatprep.subr.bf16.mxu0 0
        %1623 = vmatpush1.bf16.msra.mxu0 %v1601
        %1624 = vmatprep.subr.bf16.mxu0 0
        %1625 = vmatpush2.bf16.msra.mxu0 0
        %1626 = vmatprep.subr.bf16.mxu0 0
        %1627 = vmatpush2.bf16.msra.mxu0 0
        %1628 = vmatprep.subr.bf16.mxu0 0
        %1629 = vmatpush2.bf16.msra.mxu0 0
        %1630 = vmatprep.subr.bf16.mxu0 0
        %1631 = vmatpush2.bf16.msra.mxu0 0
        %1632 = vmatprep.subr.bf16.mxu0 0
        %1633 = vmatpush2.bf16.msra.mxu0 0
        %1634 = vmatprep.subr.bf16.mxu0 0
        %1635 = vmatpush2.bf16.msra.mxu0 0
        %1636 = vmatprep.subr.bf16.mxu0 0
        %1637 = vmatpush2.bf16.msra.mxu0 0
        %1638 = vmatprep.subr.bf16.mxu0 0
        %1639 = vmatpush2.bf16.msra.mxu0 0
        %1640 = vmatprep.mubr.bf16.mxu0 0
        %1641 = vmatmul.mubr.bf16.gmra.mxu0 %v1606
        %v1642 = vpop.f32.mrf.mxu0
        %v1643 = vadd.f32 %v1591, %v1642
        %v1644 = vpop.f32.mrf.mxu0
        %v1645 = vpop.f32.mrf.mxu0
        %v1646 = vpop.f32.mrf.mxu0
        %1647 = vdwg.mxu0
        %v1648 = vadd.f32 %v1643, %v824
        %v1649 = vld [vmem:[%s759] sm:$0x1]
        %v1650 = vld [vmem:[%s762] sm:$0x1]
        %v1651 = vsel %vm849, %v1648, 0.0
        %1652 = vadd.xlane.f32.xlu0 %v1651
        %v1653 = vpop.xlane.xlu0 %1652
        %v1654 = vrcp.pop 32.0
        %v1655 = vmul.f32 %v1653, %v1654
        %v1656 = vsub.f32 %v1648, %v1655
        %v1657 = vmul.f32 %v1656, %v1656
        %v1658 = vsel %vm849, %v1657, 0.0
        %1659 = vadd.xlane.f32.xlu0 %v1658
        %v1660 = vpop.xlane.xlu0 %1659
        %v1661 = vmul.f32 %v1660, %v1654
        %v1662 = vadd.f32 %v1661, 1e-05
        %v1663 = vrsqrt.pop %v1662
        %v1664 = vmul.f32 %v1656, %v1663
        %v1666 = vlaneseq
        %v1667 = vshrl.u32 %v1666, 7
        %v1668 = vsub.s32 0, %v1667
        %v1669 = vrot.slane %v1649, %v1668
        %v1671 = vmul.f32 %v1664, %v1669
        %v1673 = vlaneseq
        %v1674 = vshrl.u32 %v1673, 7
        %v1675 = vsub.s32 0, %v1674
        %v1676 = vrot.slane %v1650, %v1675
        %v1678 = vadd.f32 %v1671, %v1676
        %v1679 = vld [vmem:[%s767] sm:$0xf]
        %v1680 = vld [vmem:[%s767 + $0x4] sm:$0xf]
        %v1681 = vld [vmem:[%s767 + $0x8] sm:$0xf]
        %v1682 = vld [vmem:[%s767 + $0xc] sm:$0xf]
        %v1683 = vpack.c.bf16 %v1678, %v1678
        %v1684 = vld [vmem:[%s770] sm:$0x1]
        %v1686 = vlaneseq
        %v1687 = vshrl.u32 %v1686, 7
        %v1688 = vsub.s32 0, %v1687
        %v1689 = vrot.slane %v1684, %v1688
        %v1695 = vunpack.c.l.b16 %v1679
        %v1696 = vunpack.c.l.b16 %v1680
        %v1697 = vunpack.c.l.b16 %v1681
        %v1698 = vunpack.c.l.b16 %v1682
        %v1699 = vpack.c.b16 %v1696, %v1695
        %v1700 = vpack.c.b16 %v1698, %v1697
        %v1704 = vsel %vm849, %v1683, 0
        %1706 = vmatprep.subr.bf16.mxu0 0
        %1707 = vmatpush1.bf16.msra.mxu0 0
        %1708 = vmatprep.subr.bf16.mxu0 0
        %1709 = vmatpush1.bf16.msra.mxu0 0
        %1710 = vmatprep.subr.bf16.mxu0 0
        %1711 = vmatpush1.bf16.msra.mxu0 0
        %1712 = vmatprep.subr.bf16.mxu0 0
        %1713 = vmatpush1.bf16.msra.mxu0 0
        %1714 = vmatprep.subr.bf16.mxu0 0
        %1715 = vmatpush1.bf16.msra.mxu0 0
        %1716 = vmatprep.subr.bf16.mxu0 0
        %1717 = vmatpush1.bf16.msra.mxu0 0
        %1718 = vmatprep.subr.bf16.mxu0 0
        %1719 = vmatpush1.bf16.msra.mxu0 %v1700
        %1720 = vmatprep.subr.bf16.mxu0 0
        %1721 = vmatpush1.bf16.msra.mxu0 %v1699
        %1722 = vmatprep.subr.bf16.mxu0 0
        %1723 = vmatpush2.bf16.msra.mxu0 0
        %1724 = vmatprep.subr.bf16.mxu0 0
        %1725 = vmatpush2.bf16.msra.mxu0 0
        %1726 = vmatprep.subr.bf16.mxu0 0
        %1727 = vmatpush2.bf16.msra.mxu0 0
        %1728 = vmatprep.subr.bf16.mxu0 0
        %1729 = vmatpush2.bf16.msra.mxu0 0
        %1730 = vmatprep.subr.bf16.mxu0 0
        %1731 = vmatpush2.bf16.msra.mxu0 0
        %1732 = vmatprep.subr.bf16.mxu0 0
        %1733 = vmatpush2.bf16.msra.mxu0 0
        %1734 = vmatprep.subr.bf16.mxu0 0
        %1735 = vmatpush2.bf16.msra.mxu0 0
        %1736 = vmatprep.subr.bf16.mxu0 0
        %1737 = vmatpush2.bf16.msra.mxu0 0
        %1738 = vmatprep.mubr.bf16.mxu0 0
        %1739 = vmatmul.mubr.bf16.gmra.mxu0 %v1704
        %v1740 = vpop.f32.mrf.mxu0
        %v1741 = vadd.f32 %v1689, %v1740
        %v1742 = vpop.f32.mrf.mxu0
        %v1743 = vpop.f32.mrf.mxu0
        %v1744 = vpop.f32.mrf.mxu0
        %1745 = vdwg.mxu0
        %v1746 = vmul.f32 %v1741, %v1741
        %v1747 = vmul.f32 %v1741, %v1746
        %v1748 = vmul.f32 %v1747, 0.044715
        %v1749 = vadd.f32 %v1741, %v1748
        %v1750 = vmul.f32 %v1749, 0.7978846
        %v1751 = vtanh.pop %v1750
        %v1752 = vadd.f32 %v1751, 1.0
        %v1753 = vmul.f32 %v1752, 0.5
        %v1754 = vmul.f32 %v1741, %v1753
        %v1755 = vld [vmem:[%s775] sm:$0xf]
        %v1756 = vld [vmem:[%s775 + $0x4] sm:$0xf]
        %v1757 = vld [vmem:[%s775 + $0x8] sm:$0xf]
        %v1758 = vld [vmem:[%s775 + $0xc] sm:$0xf]
        %v1759 = vld [vmem:[%s775 + $0x10] sm:$0xf]
        %v1760 = vld [vmem:[%s775 + $0x14] sm:$0xf]
        %v1761 = vld [vmem:[%s775 + $0x18] sm:$0xf]
        %v1762 = vld [vmem:[%s775 + $0x1c] sm:$0xf]
        %v1763 = vpack.c.bf16 %v1754, %v1754
        %v1764 = vld [vmem:[%s778] sm:$0x1]
        %v1766 = vlaneseq
        %v1767 = vshrl.u32 %v1766, 7
        %v1768 = vsub.s32 0, %v1767
        %v1769 = vrot.slane %v1764, %v1768
        %v1779 = vunpack.c.l.b16 %v1755
        %v1780 = vunpack.c.l.b16 %v1756
        %v1781 = vunpack.c.l.b16 %v1757
        %v1782 = vunpack.c.l.b16 %v1758
        %v1783 = vunpack.c.l.b16 %v1759
        %v1784 = vunpack.c.l.b16 %v1760
        %v1785 = vunpack.c.l.b16 %v1761
        %v1786 = vunpack.c.l.b16 %v1762
        %v1787 = vpack.c.b16 %v1780, %v1779
        %v1788 = vpack.c.b16 %v1782, %v1781
        %v1789 = vpack.c.b16 %v1784, %v1783
        %v1790 = vpack.c.b16 %v1786, %v1785
        %vm1795 = vcmask 523264
        %v1797 = vsel %vm1795, %v1763, 0
        %1799 = vmatprep.subr.bf16.mxu0 0
        %1800 = vmatpush1.bf16.msra.mxu0 0
        %1801 = vmatprep.subr.bf16.mxu0 0
        %1802 = vmatpush1.bf16.msra.mxu0 0
        %1803 = vmatprep.subr.bf16.mxu0 0
        %1804 = vmatpush1.bf16.msra.mxu0 0
        %1805 = vmatprep.subr.bf16.mxu0 0
        %1806 = vmatpush1.bf16.msra.mxu0 0
        %1807 = vmatprep.subr.bf16.mxu0 0
        %1808 = vmatpush1.bf16.msra.mxu0 %v1790
        %1809 = vmatprep.subr.bf16.mxu0 0
        %1810 = vmatpush1.bf16.msra.mxu0 %v1789
        %1811 = vmatprep.subr.bf16.mxu0 0
        %1812 = vmatpush1.bf16.msra.mxu0 %v1788
        %1813 = vmatprep.subr.bf16.mxu0 0
        %1814 = vmatpush1.bf16.msra.mxu0 %v1787
        %1815 = vmatprep.subr.bf16.mxu0 0
        %1816 = vmatpush2.bf16.msra.mxu0 0
        %1817 = vmatprep.subr.bf16.mxu0 0
        %1818 = vmatpush2.bf16.msra.mxu0 0
        %1819 = vmatprep.subr.bf16.mxu0 0
        %1820 = vmatpush2.bf16.msra.mxu0 0
        %1821 = vmatprep.subr.bf16.mxu0 0
        %1822 = vmatpush2.bf16.msra.mxu0 0
        %1823 = vmatprep.subr.bf16.mxu0 0
        %1824 = vmatpush2.bf16.msra.mxu0 0
        %1825 = vmatprep.subr.bf16.mxu0 0
        %1826 = vmatpush2.bf16.msra.mxu0 0
        %1827 = vmatprep.subr.bf16.mxu0 0
        %1828 = vmatpush2.bf16.msra.mxu0 0
        %1829 = vmatprep.subr.bf16.mxu0 0
        %1830 = vmatpush2.bf16.msra.mxu0 0
        %1831 = vmatprep.mubr.bf16.mxu0 0
        %1832 = vmatmul.mubr.bf16.gmra.mxu0 %v1797
        %v1833 = vpop.f32.mrf.mxu0
        %v1834 = vadd.f32 %v1769, %v1833
        %v1835 = vpop.f32.mrf.mxu0
        %v1836 = vpop.f32.mrf.mxu0
        %v1837 = vpop.f32.mrf.mxu0
        %1838 = vdwg.mxu0
        %v1839 = vadd.f32 %v1834, %v1678
        %v1840 = vld [vmem:[%s781] sm:$0x1]
        %v1841 = vld [vmem:[%s784] sm:$0x1]
        %v1842 = vsel %vm849, %v1839, 0.0
        %1843 = vadd.xlane.f32.xlu0 %v1842
        %v1844 = vpop.xlane.xlu0 %1843
        %v1845 = vmul.f32 %v1844, %v1654
        %v1846 = vsub.f32 %v1839, %v1845
        %v1847 = vmul.f32 %v1846, %v1846
        %v1848 = vsel %vm849, %v1847, 0.0
        %1849 = vadd.xlane.f32.xlu0 %v1848
        %v1850 = vpop.xlane.xlu0 %1849
        %v1851 = vmul.f32 %v1850, %v1654
        %v1852 = vadd.f32 %v1851, 1e-05
        %v1853 = vrsqrt.pop %v1852
        %v1854 = vmul.f32 %v1846, %v1853
        %v1856 = vlaneseq
        %v1857 = vshrl.u32 %v1856, 7
        %v1858 = vsub.s32 0, %v1857
        %v1859 = vrot.slane %v1840, %v1858
        %v1861 = vmul.f32 %v1854, %v1859
        %v1863 = vlaneseq
        %v1864 = vshrl.u32 %v1863, 7
        %v1865 = vsub.s32 0, %v1864
        %v1866 = vrot.slane %v1841, %v1865
        %v1868 = vadd.f32 %v1861, %v1866
        %1869 = vst.msk [vmem:[#allocation2] sm:$0xff] %vm849, %v1868
        %p1870 = scmp.eq.s32.totalorder %s41, 1
        // Predicated region
        $region93: #{backbone_forward.1} parent=87 // pred_check
          %p1871 = pneg %p1870
        $region94: #{backbone_forward.1} parent=87 // pred_check_branch
          %1873 = sbr.rel (%p1871) target = $region96
        $region95: #{backbone_forward.1} parent=87 // pred_region
          %1874 = vst.msk [vmem:[%s730] sm:$0xff] %vm849, %v1868
          %v1875 = vld [vmem:[%s15] sm:$0xf]
          %v1876 = vld [vmem:[%s15 + $0x4] sm:$0xf]
          %v1877 = vld [vmem:[%s15 + $0x8] sm:$0xf]
          %v1878 = vld [vmem:[%s15 + $0xc] sm:$0xf]
          %v1879 = vpack.c.bf16 %v1868, %v1868
          %v1880 = vld [vmem:[%s16] sm:$0x1]
          %v1885 = vunpack.c.l.b16 %v1875
          %v1886 = vunpack.c.l.b16 %v1876
          %v1887 = vunpack.c.l.b16 %v1877
          %v1888 = vunpack.c.l.b16 %v1878
          %v1889 = vpack.c.b16 %v1886, %v1885
          %v1890 = vpack.c.b16 %v1888, %v1887
          %v1894 = vsel %vm849, %v1879, 0
          %1896 = vmatprep.subr.bf16.mxu0 0
          %1897 = vmatpush1.bf16.msra.mxu0 0
          %1898 = vmatprep.subr.bf16.mxu0 0
          %1899 = vmatpush1.bf16.msra.mxu0 0
          %1900 = vmatprep.subr.bf16.mxu0 0
          %1901 = vmatpush1.bf16.msra.mxu0 0
          %1902 = vmatprep.subr.bf16.mxu0 0
          %1903 = vmatpush1.bf16.msra.mxu0 0
          %1904 = vmatprep.subr.bf16.mxu0 0
          %1905 = vmatpush1.bf16.msra.mxu0 0
          %1906 = vmatprep.subr.bf16.mxu0 0
          %1907 = vmatpush1.bf16.msra.mxu0 0
          %1908 = vmatprep.subr.bf16.mxu0 0
          %1909 = vmatpush1.bf16.msra.mxu0 %v1890
          %1910 = vmatprep.subr.bf16.mxu0 0
          %1911 = vmatpush1.bf16.msra.mxu0 %v1889
          %1912 = vmatprep.subr.bf16.mxu0 0
          %1913 = vmatpush2.bf16.msra.mxu0 0
          %1914 = vmatprep.subr.bf16.mxu0 0
          %1915 = vmatpush2.bf16.msra.mxu0 0
          %1916 = vmatprep.subr.bf16.mxu0 0
          %1917 = vmatpush2.bf16.msra.mxu0 0
          %1918 = vmatprep.subr.bf16.mxu0 0
          %1919 = vmatpush2.bf16.msra.mxu0 0
          %1920 = vmatprep.subr.bf16.mxu0 0
          %1921 = vmatpush2.bf16.msra.mxu0 0
          %1922 = vmatprep.subr.bf16.mxu0 0
          %1923 = vmatpush2.bf16.msra.mxu0 0
          %1924 = vmatprep.subr.bf16.mxu0 0
          %1925 = vmatpush2.bf16.msra.mxu0 0
          %1926 = vmatprep.subr.bf16.mxu0 0
          %1927 = vmatpush2.bf16.msra.mxu0 0
          %1928 = vmatprep.mubr.bf16.mxu0 0
          %1929 = vmatmul.mubr.bf16.gmra.mxu0 %v1894
          %v1930 = vpop.f32.mrf.mxu0
          %v1931 = vadd.f32 %v1880, %v1930
          %v1932 = vpop.f32.mrf.mxu0
          %v1933 = vpop.f32.mrf.mxu0
          %v1934 = vpop.f32.mrf.mxu0
          %1935 = vdwg.mxu0
          %v1936 = vtanh.pop %v1931
          %vm1937 = vcmask 253952
          %1938 = vst.msk [vmem:[%s736] sm:$0x1] %vm1937, %v1936
        $region96: #{backbone_forward.1} parent=87 // pred_fallthru
          _
        %s1939 = sand.u32 %s478, 1
        %s1940 = scalar_lea.sflag [#allocation4], %s1939
        %s1941 = sand.u32 %s478, 1
        %s1942 = smul.addr %s1941, 8
        %s1943 = scalar_lea.vmem [#allocation3], %s1942
        %s1944 = sand.u32 %s504, 1
        %s1945 = scalar_lea.sflag [#allocation6], %s1944
        %s1946 = sand.u32 %s504, 1
        %s1947 = scalar_lea.vmem [#allocation5], %s1946
        // Predicated region
        $region97: #{backbone_forward.1} parent=87 // pred_check
          %p1948 = pneg %p488
        $region98: #{backbone_forward.1} parent=87 // pred_check_branch
          %1950 = sbr.rel (%p1948) target = $region100
        $region99: #{backbone_forward.1} parent=87 // pred_region
          %s1952 = ssub.s32 128, 128
          %1953 = vsyncadd %s1940, %s1952
          %s1954 = smul.addr %s40, 128
          %s1955 = scalar_lea.hbm %s17, %s1954
          %s1957 = sshll.u32 %s1943, 4
          %s1958 = int_to_ptr.vmem [resolvable:$true] %s1957
          %1960 = dma.vmem_to_hbm [thread:$0]  %s1958, 128, %s1955, %s1940
        $region100: #{backbone_forward.1} parent=87 // pred_fallthru
          _
        // Predicated region
        $region101: #{backbone_forward.1} parent=87 // pred_check
          %p1961 = pneg %p514
        $region102: #{backbone_forward.1} parent=87 // pred_check_branch
          %1963 = sbr.rel (%p1961) target = $region104
        $region103: #{backbone_forward.1} parent=87 // pred_region
          %s1965 = ssub.s32 16, 16
          %1966 = vsyncadd %s1945, %s1965
          %s1967 = smul.addr %s40, 16
          %s1968 = scalar_lea.hbm %s18, %s1967
          %s1970 = sshll.u32 %s1947, 4
          %s1971 = int_to_ptr.vmem [resolvable:$true] %s1970
          %1973 = dma.vmem_to_hbm [thread:$0]  %s1971, 16, %s1968, %s1945
        $region104: #{backbone_forward.1} parent=87 // pred_fallthru
          _
      $region88: #{backbone_forward.1} parent=5 // pred_fallthru
        _
      %p1974 = scmp.le.s32.totalorder 2, %s31
      // Predicated region
      $region105: #{backbone_forward.1} parent=5 // pred_check
        %p1975 = pneg %p1974
      $region106: #{backbone_forward.1} parent=5 // pred_check_branch
        %1977 = sbr.rel (%p1975) target = $region108
      $region107: #{backbone_forward.1} parent=5 // pred_region
        %s1978 = ssub.s32 %s31, 2
        // Predicated region
        $region109: #{backbone_forward.1} parent=107 // pred_check
          %p1979 = pneg %p494
        $region110: #{backbone_forward.1} parent=107 // pred_check_branch
          %1981 = sbr.rel (%p1979) target = $region112
        $region111: #{backbone_forward.1} parent=107 // pred_region
          %s1982 = sand.u32 %s479, 1
          %s1983 = scalar_lea.sflag [#allocation4], %s1982
          %s1984 = sand.u32 %s479, 1
          %s1985 = smul.addr %s1984, 8
          %s1986 = scalar_lea.vmem [#allocation3], %s1985
          %1987 = dma.done %s1983, 128
        $region112: #{backbone_forward.1} parent=107 // pred_fallthru
          _
        // Predicated region
        $region113: #{backbone_forward.1} parent=107 // pred_check
          %p1988 = pneg %p520
        $region114: #{backbone_forward.1} parent=107 // pred_check_branch
          %1990 = sbr.rel (%p1988) target = $region116
        $region115: #{backbone_forward.1} parent=107 // pred_region
          %s1991 = sand.u32 %s505, 1
          %s1992 = scalar_lea.sflag [#allocation6], %s1991
          %s1993 = sand.u32 %s505, 1
          %s1994 = scalar_lea.vmem [#allocation5], %s1993
          %1995 = dma.done %s1992, 16
        $region116: #{backbone_forward.1} parent=107 // pred_fallthru
          _
      $region108: #{backbone_forward.1} parent=5 // pred_fallthru
        _
    $region6: #{backbone_forward.1} parent=1 // loop_footer
      %s35 = sadd.s32 1, %s31
    $region7: #{backbone_forward.1} parent=1 // loop_footer_branch
      %30 = sbr.rel target = $region3
    $region8: #{backbone_forward.1} parent=1 // loop_exit
      _
    %1996 = vsyncpa [#allocation4], 1
    %s1997 = scalar_lea.sflag [#allocation4], 1
    %1998 = vsyncpa %s1997, 1
    %1999 = vsyncpa [#allocation6], 1
    %s2000 = scalar_lea.sflag [#allocation6], 1
    %2001 = vsyncpa %s2000, 1

</llo_original>
